<compile_context>
chip_gen: v6e
topology: v6e:2x2x1
jax: 0.10.0
libtpu: 0.0.40
codegen_flags: <defaults>
</compile_context>

<pallas_src>
import jax
import jax.numpy as jnp
from jax.experimental import pallas as pl
from jax.experimental.pallas import tpu as pltpu

EPS = 1e-3  # BatchNorm2d eps=0.001


def se_conv_bn_conv_kernel(x_ref, s_ref, w1_ref, gamma_ref, beta_ref, w2_ref, o_ref):
    # x_ref:     (Cin, P)  input feature map, channel-major (P = H*W, N == 1)
    # s_ref:     (1, Cin)  SE gate logits (from the [1, Cin, 1, 1] tensor)
    # w1_ref:    (C1, Cin) 1x1 conv weight (native OIHW squeezed)
    # gamma_ref: (C1, 1)   BN scale
    # beta_ref:  (C1, 1)   BN shift
    # w2_ref:    (C2, C1)  1x1 conv weight (native OIHW squeezed)
    # o_ref:     (C2, P)
    gate = jax.nn.sigmoid(s_ref[...])                      # (1, Cin)
    # Fold the per-channel gate into w1 (N==1, so the gate is row-constant in x).
    w1g = w1_ref[...] * gate                               # (C1, Cin)

    y1 = jnp.dot(w1g, x_ref[...],
                 preferred_element_type=jnp.float32)       # (C1, P)

    # BatchNorm2d (training mode): biased batch stats over P, one-pass sum/sumsq.
    p = y1.shape[1]
    s1 = jnp.sum(y1, axis=1, keepdims=True)                # (C1, 1)
    s2 = jnp.sum(y1 * y1, axis=1, keepdims=True)           # (C1, 1)
    mean = s1 / p
    var = s2 / p - mean * mean
    inv = jax.lax.rsqrt(var + EPS)
    scale = inv * gamma_ref[...]                           # (C1, 1)
    shift = beta_ref[...] - mean * scale                   # (C1, 1)
    y1n = y1 * scale + shift                               # (C1, P)

    o_ref[...] = jnp.dot(w2_ref[...], y1n,
                         preferred_element_type=jnp.float32)   # (C2, P)


def se_conv_bn_conv(x234, x238, w1, gamma, beta, w2):
    """x234: (1, Cin, H, W) NCHW; x238: (1, Cin, 1, 1); returns (1, C2, H, W)."""
    N, Cin, H, W = x234.shape
    assert N == 1, "gate-folding / channel-major layout assumes N == 1"
    C1 = w1.shape[0]
    C2 = w2.shape[0]
    P = H * W

    # Pure reshapes only — no transposes anywhere in the wrapper.
    x_mat = x234.reshape(Cin, P)                           # (Cin, P)
    s_mat = x238.reshape(1, Cin)                           # (1, Cin)
    w1_m = w1.reshape(C1, Cin)                             # (C1, Cin)
    w2_m = w2.reshape(C2, C1)                              # (C2, C1)
    gamma2 = gamma.reshape(C1, 1)
    beta2 = beta.reshape(C1, 1)

    flops = 2 * (C1 * Cin * P + C2 * C1 * P)
    bytes_accessed = 4 * (Cin * P + Cin + C1 * Cin + 2 * C1 + C2 * C1 + C2 * P)

    vmem = pl.BlockSpec(memory_space=pltpu.MemorySpace.VMEM)
    out = pl.pallas_call(
        se_conv_bn_conv_kernel,
        out_shape=jax.ShapeDtypeStruct((C2, P), jnp.float32),
        in_specs=[vmem] * 6,
        out_specs=vmem,
        cost_estimate=pl.CostEstimate(
            flops=flops, transcendentals=Cin, bytes_accessed=bytes_accessed),
    )(x_mat, s_mat, w1_m, gamma2, beta2, w2_m)

    # (C2, P) -> (1, C2, H, W): pure reshape.
    return out.reshape(N, C2, H, W)


def reference(x234, x238, w1, gamma, beta, w2):
    """Pure-JAX reference mirroring the PyTorch module (training-mode BN)."""
    gate = jax.nn.sigmoid(x238)                            # (N, Cin, 1, 1)
    x = x234 * gate
    y1 = jax.lax.conv_general_dilated(
        x, w1, window_strides=(1, 1), padding="VALID",
        dimension_numbers=("NCHW", "OIHW", "NCHW"))
    mean = jnp.mean(y1, axis=(0, 2, 3), keepdims=True)
    var = jnp.mean((y1 - mean) ** 2, axis=(0, 2, 3), keepdims=True)
    y1n = (y1 - mean) * jax.lax.rsqrt(var + EPS)
    y1n = y1n * gamma.reshape(1, -1, 1, 1) + beta.reshape(1, -1, 1, 1)
    y2 = jax.lax.conv_general_dilated(
        y1n, w2, window_strides=(1, 1), padding="VALID",
        dimension_numbers=("NCHW", "OIHW", "NCHW"))
    return y2


if __name__ == "__main__":
    N, Cin, H, W = 1, 432, 14, 14
    C1, C2 = 144, 864

    key = jax.random.PRNGKey(0)
    k1, k2, k3, k4 = jax.random.split(key, 4)

    x234 = jax.random.normal(k1, (N, Cin, H, W), dtype=jnp.float32)
    x238 = jax.random.normal(k2, (N, Cin, 1, 1), dtype=jnp.float32)

    # Deterministic parameter init (synthetic; not a checkpoint load)
    w1 = jax.random.normal(k3, (C1, Cin, 1, 1), dtype=jnp.float32) * 0.05
    w2 = jax.random.normal(k4, (C2, C1, 1, 1), dtype=jnp.float32) * 0.05
    gamma = jnp.ones((C1,), dtype=jnp.float32)   # BatchNorm2d weight init
    beta = jnp.zeros((C1,), dtype=jnp.float32)   # BatchNorm2d bias init

    out = jax.block_until_ready(se_conv_bn_conv(x234, x238, w1, gamma, beta, w2))
    ref = jax.block_until_ready(reference(x234, x238, w1, gamma, beta, w2))

    assert out.shape == (N, C2, H, W), out.shape
    assert jnp.allclose(out, ref, atol=1e-3, rtol=1e-3), float(
        jnp.max(jnp.abs(out - ref)))
    print("KERNEL_OK")
</pallas_src>

<mosaic_0001>
module attributes {stable_mosaic.version = 11 : i64} {
  func.func @se_conv_bn_conv_kernel(%arg0: memref<432x196xf32, #tpu.memory_space<vmem>>, %arg1: memref<1x432xf32, #tpu.memory_space<vmem>>, %arg2: memref<144x432xf32, #tpu.memory_space<vmem>>, %arg3: memref<144x1xf32, #tpu.memory_space<vmem>>, %arg4: memref<144x1xf32, #tpu.memory_space<vmem>>, %arg5: memref<864x144xf32, #tpu.memory_space<vmem>>, %arg6: memref<864x196xf32, #tpu.memory_space<vmem>>) attributes {dimension_semantics = [], scalar_prefetch = 0 : i64, scratch_operands = 0 : i64, tpu.core_type = #tpu.core_type<tc>} {
    %c0 = arith.constant 0 : index
    %c0_0 = arith.constant 0 : index
    %0 = vector.load %arg1[%c0, %c0_0] : memref<1x432xf32, #tpu.memory_space<vmem>>, vector<1x432xf32>
    %1 = arith.negf %0 : vector<1x432xf32>
    %2 = math.exp %1 : vector<1x432xf32>
    %cst = arith.constant 1.000000e+00 : f32
    %3 = vector.broadcast %cst : f32 to vector<1x432xf32>
    %4 = arith.addf %3, %2 : vector<1x432xf32>
    %5 = arith.divf %3, %4 : vector<1x432xf32>
    %c0_1 = arith.constant 0 : index
    %c0_2 = arith.constant 0 : index
    %6 = vector.load %arg2[%c0_1, %c0_2] : memref<144x432xf32, #tpu.memory_space<vmem>>, vector<144x432xf32>
    %7 = vector.broadcast %5 : vector<1x432xf32> to vector<144x432xf32>
    %8 = arith.mulf %6, %7 : vector<144x432xf32>
    %c0_3 = arith.constant 0 : index
    %c0_4 = arith.constant 0 : index
    %9 = vector.load %arg0[%c0_3, %c0_4] : memref<432x196xf32, #tpu.memory_space<vmem>>, vector<432x196xf32>
    %cst_5 = arith.constant dense<0.000000e+00> : vector<144x196xf32>
    %10 = tpu.matmul %8, %9, %cst_5 {dimension_numbers = #tpu.dot_dimension_numbers<[1], [0], [0], [1], [0, 0, 1, 1], [], []>} : vector<144x432xf32>, vector<432x196xf32>, vector<144x196xf32> -> vector<144x196xf32>
    %cst_6 = arith.constant dense<0.000000e+00> : vector<144xf32>
    %11 = vector.multi_reduction <add>, %10, %cst_6 [1] : vector<144x196xf32> to vector<144xf32>
    %12 = vector.shape_cast %11 : vector<144xf32> to vector<144x1xf32>
    %13 = arith.mulf %10, %10 : vector<144x196xf32>
    %cst_7 = arith.constant dense<0.000000e+00> : vector<144xf32>
    %14 = vector.multi_reduction <add>, %13, %cst_7 [1] : vector<144x196xf32> to vector<144xf32>
    %15 = vector.shape_cast %14 : vector<144xf32> to vector<144x1xf32>
    %cst_8 = arith.constant 1.960000e+02 : f32
    %16 = vector.broadcast %cst_8 : f32 to vector<144x1xf32>
    %17 = arith.divf %12, %16 : vector<144x1xf32>
    %cst_9 = arith.constant 1.960000e+02 : f32
    %18 = vector.broadcast %cst_9 : f32 to vector<144x1xf32>
    %19 = arith.divf %15, %18 : vector<144x1xf32>
    %20 = arith.mulf %17, %17 : vector<144x1xf32>
    %21 = arith.subf %19, %20 : vector<144x1xf32>
    %cst_10 = arith.constant 1.000000e-03 : f32
    %22 = vector.broadcast %cst_10 : f32 to vector<144x1xf32>
    %23 = arith.addf %21, %22 : vector<144x1xf32>
    %24 = math.rsqrt %23 : vector<144x1xf32>
    %c0_11 = arith.constant 0 : index
    %c0_12 = arith.constant 0 : index
    %25 = vector.load %arg3[%c0_11, %c0_12] : memref<144x1xf32, #tpu.memory_space<vmem>>, vector<144x1xf32>
    %26 = arith.mulf %24, %25 : vector<144x1xf32>
    %c0_13 = arith.constant 0 : index
    %c0_14 = arith.constant 0 : index
    %27 = vector.load %arg4[%c0_13, %c0_14] : memref<144x1xf32, #tpu.memory_space<vmem>>, vector<144x1xf32>
    %28 = arith.mulf %17, %26 : vector<144x1xf32>
    %29 = arith.subf %27, %28 : vector<144x1xf32>
    %30 = vector.broadcast %26 : vector<144x1xf32> to vector<144x196xf32>
    %31 = arith.mulf %10, %30 : vector<144x196xf32>
    %32 = vector.broadcast %29 : vector<144x1xf32> to vector<144x196xf32>
    %33 = arith.addf %31, %32 : vector<144x196xf32>
    %c0_15 = arith.constant 0 : index
    %c0_16 = arith.constant 0 : index
    %34 = vector.load %arg5[%c0_15, %c0_16] : memref<864x144xf32, #tpu.memory_space<vmem>>, vector<864x144xf32>
    %cst_17 = arith.constant dense<0.000000e+00> : vector<864x196xf32>
    %35 = tpu.matmul %34, %33, %cst_17 {dimension_numbers = #tpu.dot_dimension_numbers<[1], [0], [0], [1], [0, 0, 1, 1], [], []>} : vector<864x144xf32>, vector<144x196xf32>, vector<864x196xf32> -> vector<864x196xf32>
    %c0_18 = arith.constant 0 : index
    %c0_19 = arith.constant 0 : index
    %36 = vector.load %arg6[%c0_18, %c0_19] : memref<864x196xf32, #tpu.memory_space<vmem>>, vector<864x196xf32>
    tpu.vector_store %arg6[%c0_18, %c0_19], %35 {strides = array<i32>} : memref<864x196xf32, #tpu.memory_space<vmem>>, vector<864x196xf32>,
    return
  }
}

</mosaic_0001>

<llo_original>
// kernel: tpu_custom_call.1
$region0: #{tpu_custom_call.1}
  #allocation0 [shape = 'u32[]', space=smem, size = 0x4, offset = 0x4, fixed_abs, tag = 'smem constant byte address 0x4 - core index']
  #allocation1 [shape = 'u32[144,128]{1,0:T(1,128)}', space=vmem, size = 0x12000, scoped, tag = 'internal scratch']
  %s0 = inlined_call_operand.vmem [shape: f32[432,196], index: 0, kind: input, shape index: {}]
  %s1 = inlined_call_operand.vmem [shape: f32[1,432], index: 1, kind: input, shape index: {}]
  %s2 = inlined_call_operand.vmem [shape: f32[144,432], index: 2, kind: input, shape index: {}]
  %s3 = inlined_call_operand.vmem [shape: f32[144,1], index: 3, kind: input, shape index: {}]
  %s4 = inlined_call_operand.vmem [shape: f32[144,1], index: 4, kind: input, shape index: {}]
  %s5 = inlined_call_operand.vmem [shape: f32[864,144], index: 5, kind: input, shape index: {}]
  %s6 = inlined_call_operand.vmem [shape: f32[864,196], index: 6, kind: output, shape index: {}]
  %s7 = sld [smem:[#allocation0]]
  $region34: #{tpu_custom_call.1} parent=0
    _
  %s9 = ssub.s32 1, %s7
  %s10 = scalar_select 0, %s9, %s7
  // Predicated region
  $region2: #{tpu_custom_call.1} parent=0 // pred_check
    _
  $region3: #{tpu_custom_call.1} parent=0 // pred_check_branch
    %12 = sbr.rel (0) target = $region5
  $region4: #{tpu_custom_call.1} parent=0 // pred_region
    _
  $region5: #{tpu_custom_call.1} parent=0 // pred_fallthru
    _
  // Predicated region
  $region6: #{tpu_custom_call.1} parent=0 // pred_check
    _
  $region7: #{tpu_custom_call.1} parent=0 // pred_check_branch
    %14 = sbr.rel (0) target = $region9
  $region8: #{tpu_custom_call.1} parent=0 // pred_region
    _
  $region9: #{tpu_custom_call.1} parent=0 // pred_fallthru
    _
  // Predicated region
  $region10: #{tpu_custom_call.1} parent=0 // pred_check
    _
  $region11: #{tpu_custom_call.1} parent=0 // pred_check_branch
    %16 = sbr.rel (0) target = $region13
  $region12: #{tpu_custom_call.1} parent=0 // pred_region
    _
  $region13: #{tpu_custom_call.1} parent=0 // pred_fallthru
    _
  // Predicated region
  $region14: #{tpu_custom_call.1} parent=0 // pred_check
    _
  $region15: #{tpu_custom_call.1} parent=0 // pred_check_branch
    %18 = sbr.rel (0) target = $region17
  $region16: #{tpu_custom_call.1} parent=0 // pred_region
    _
  $region17: #{tpu_custom_call.1} parent=0 // pred_fallthru
    _
  // Predicated region
  $region18: #{tpu_custom_call.1} parent=0 // pred_check
    _
  $region19: #{tpu_custom_call.1} parent=0 // pred_check_branch
    %20 = sbr.rel (0) target = $region21
  $region20: #{tpu_custom_call.1} parent=0 // pred_region
    _
  $region21: #{tpu_custom_call.1} parent=0 // pred_fallthru
    _
  // Predicated region
  $region22: #{tpu_custom_call.1} parent=0 // pred_check
    _
  $region23: #{tpu_custom_call.1} parent=0 // pred_check_branch
    %22 = sbr.rel (0) target = $region25
  $region24: #{tpu_custom_call.1} parent=0 // pred_region
    _
  $region25: #{tpu_custom_call.1} parent=0 // pred_fallthru
    _
  %v23 = vld [vmem:[%s1] sm:$0xf]
  %v24 = vxor.u32 %v23, 2147483648
  %v25 = vmul.f32 %v24, 1.442695
  %v26 = vpow.pop %v25
  %v27 = vadd.f32 %v26, 1.0
  %v28 = vrcp.pop %v27
  %v29 = vmul.f32 1.0, %v28
  %v30 = vld [vmem:[%s2] sm:$0xff]
  %v31 = vld [vmem:[%s2 + $0x8] sm:$0xff]
  %v32 = vld [vmem:[%s2 + $0x10] sm:$0xff]
  %v33 = vld [vmem:[%s2 + $0x18] sm:$0xff]
  %v34 = vld [vmem:[%s2 + $0x20] sm:$0xff]
  %v35 = vld [vmem:[%s2 + $0x28] sm:$0xff]
  %v36 = vld [vmem:[%s2 + $0x30] sm:$0xff]
  %v37 = vld [vmem:[%s2 + $0x38] sm:$0xff]
  %v38 = vld [vmem:[%s2 + $0x40] sm:$0xff]
  %v39 = vld [vmem:[%s2 + $0x48] sm:$0xff]
  %v40 = vld [vmem:[%s2 + $0x50] sm:$0xff]
  %v41 = vld [vmem:[%s2 + $0x58] sm:$0xff]
  %v42 = vld [vmem:[%s2 + $0x60] sm:$0xff]
  %v43 = vld [vmem:[%s2 + $0x68] sm:$0xff]
  %v44 = vld [vmem:[%s2 + $0x70] sm:$0xff]
  %v45 = vld [vmem:[%s2 + $0x78] sm:$0xff]
  %v46 = vld [vmem:[%s2 + $0x80] sm:$0xff]
  %v47 = vld [vmem:[%s2 + $0x88] sm:$0xff]
  %v48 = vld [vmem:[%s2 + $0x90] sm:$0xff]
  %v49 = vld [vmem:[%s2 + $0x98] sm:$0xff]
  %v50 = vld [vmem:[%s2 + $0xa0] sm:$0xff]
  %v51 = vld [vmem:[%s2 + $0xa8] sm:$0xff]
  %v52 = vld [vmem:[%s2 + $0xb0] sm:$0xff]
  %v53 = vld [vmem:[%s2 + $0xb8] sm:$0xff]
  %v54 = vld [vmem:[%s2 + $0xc0] sm:$0xff]
  %v55 = vld [vmem:[%s2 + $0xc8] sm:$0xff]
  %v56 = vld [vmem:[%s2 + $0xd0] sm:$0xff]
  %v57 = vld [vmem:[%s2 + $0xd8] sm:$0xff]
  %v58 = vld [vmem:[%s2 + $0xe0] sm:$0xff]
  %v59 = vld [vmem:[%s2 + $0xe8] sm:$0xff]
  %v60 = vld [vmem:[%s2 + $0xf0] sm:$0xff]
  %v61 = vld [vmem:[%s2 + $0xf8] sm:$0xff]
  %v62 = vld [vmem:[%s2 + $0x100] sm:$0xff]
  %v63 = vld [vmem:[%s2 + $0x108] sm:$0xff]
  %v64 = vld [vmem:[%s2 + $0x110] sm:$0xff]
  %v65 = vld [vmem:[%s2 + $0x118] sm:$0xff]
  %v66 = vld [vmem:[%s2 + $0x120] sm:$0xff]
  %v67 = vld [vmem:[%s2 + $0x128] sm:$0xff]
  %v68 = vld [vmem:[%s2 + $0x130] sm:$0xff]
  %v69 = vld [vmem:[%s2 + $0x138] sm:$0xff]
  %v70 = vld [vmem:[%s2 + $0x140] sm:$0xff]
  %v71 = vld [vmem:[%s2 + $0x148] sm:$0xff]
  %v72 = vld [vmem:[%s2 + $0x150] sm:$0xff]
  %v73 = vld [vmem:[%s2 + $0x158] sm:$0xff]
  %v74 = vld [vmem:[%s2 + $0x160] sm:$0xff]
  %v75 = vld [vmem:[%s2 + $0x168] sm:$0xff]
  %v76 = vld [vmem:[%s2 + $0x170] sm:$0xff]
  %v77 = vld [vmem:[%s2 + $0x178] sm:$0xff]
  %v78 = vld [vmem:[%s2 + $0x180] sm:$0xff]
  %v79 = vld [vmem:[%s2 + $0x188] sm:$0xff]
  %v80 = vld [vmem:[%s2 + $0x190] sm:$0xff]
  %v81 = vld [vmem:[%s2 + $0x198] sm:$0xff]
  %v82 = vld [vmem:[%s2 + $0x1a0] sm:$0xff]
  %v83 = vld [vmem:[%s2 + $0x1a8] sm:$0xff]
  %v84 = vld [vmem:[%s2 + $0x1b0] sm:$0xff]
  %v85 = vld [vmem:[%s2 + $0x1b8] sm:$0xff]
  %v86 = vld [vmem:[%s2 + $0x1c0] sm:$0xff]
  %v87 = vld [vmem:[%s2 + $0x1c8] sm:$0xff]
  %v88 = vld [vmem:[%s2 + $0x1d0] sm:$0xff]
  %v89 = vld [vmem:[%s2 + $0x1d8] sm:$0xff]
  %v90 = vld [vmem:[%s2 + $0x1e0] sm:$0xff]
  %v91 = vld [vmem:[%s2 + $0x1e8] sm:$0xff]
  %v92 = vld [vmem:[%s2 + $0x1f0] sm:$0xff]
  %v93 = vld [vmem:[%s2 + $0x1f8] sm:$0xff]
  %v94 = vld [vmem:[%s2 + $0x200] sm:$0xff]
  %v95 = vld [vmem:[%s2 + $0x208] sm:$0xff]
  %v96 = vld [vmem:[%s2 + $0x210] sm:$0xff]
  %v97 = vld [vmem:[%s2 + $0x218] sm:$0xff]
  %v98 = vld [vmem:[%s2 + $0x220] sm:$0xff]
  %v99 = vld [vmem:[%s2 + $0x228] sm:$0xff]
  %v100 = vld [vmem:[%s2 + $0x230] sm:$0xff]
  %v101 = vld [vmem:[%s2 + $0x238] sm:$0xff]
  %v103 = vlaneseq
  %v104 = vshrl.u32 %v103, 7
  %v105 = vsub.s32 0, %v104
  %v106 = vrot.slane %v29, %v105
  %v107 = vlaneseq
  %v108 = vshrl.u32 %v107, 7
  %v109 = vsub.s32 1, %v108
  %v110 = vrot.slane %v29, %v109
  %v111 = vlaneseq
  %v112 = vshrl.u32 %v111, 7
  %v113 = vsub.s32 2, %v112
  %v114 = vrot.slane %v29, %v113
  %v115 = vlaneseq
  %v116 = vshrl.u32 %v115, 7
  %v117 = vsub.s32 3, %v116
  %v118 = vrot.slane %v29, %v117
  %v123 = vmul.f32 %v30, %v106
  %v124 = vmul.f32 %v31, %v110
  %v125 = vmul.f32 %v32, %v114
  %v126 = vmul.f32 %v33, %v118
  %v127 = vmul.f32 %v34, %v106
  %v128 = vmul.f32 %v35, %v110
  %v129 = vmul.f32 %v36, %v114
  %v130 = vmul.f32 %v37, %v118
  %v131 = vmul.f32 %v38, %v106
  %v132 = vmul.f32 %v39, %v110
  %v133 = vmul.f32 %v40, %v114
  %v134 = vmul.f32 %v41, %v118
  %v135 = vmul.f32 %v42, %v106
  %v136 = vmul.f32 %v43, %v110
  %v137 = vmul.f32 %v44, %v114
  %v138 = vmul.f32 %v45, %v118
  %v139 = vmul.f32 %v46, %v106
  %v140 = vmul.f32 %v47, %v110
  %v141 = vmul.f32 %v48, %v114
  %v142 = vmul.f32 %v49, %v118
  %v143 = vmul.f32 %v50, %v106
  %v144 = vmul.f32 %v51, %v110
  %v145 = vmul.f32 %v52, %v114
  %v146 = vmul.f32 %v53, %v118
  %v147 = vmul.f32 %v54, %v106
  %v148 = vmul.f32 %v55, %v110
  %v149 = vmul.f32 %v56, %v114
  %v150 = vmul.f32 %v57, %v118
  %v151 = vmul.f32 %v58, %v106
  %v152 = vmul.f32 %v59, %v110
  %v153 = vmul.f32 %v60, %v114
  %v154 = vmul.f32 %v61, %v118
  %v155 = vmul.f32 %v62, %v106
  %v156 = vmul.f32 %v63, %v110
  %v157 = vmul.f32 %v64, %v114
  %v158 = vmul.f32 %v65, %v118
  %v159 = vmul.f32 %v66, %v106
  %v160 = vmul.f32 %v67, %v110
  %v161 = vmul.f32 %v68, %v114
  %v162 = vmul.f32 %v69, %v118
  %v163 = vmul.f32 %v70, %v106
  %v164 = vmul.f32 %v71, %v110
  %v165 = vmul.f32 %v72, %v114
  %v166 = vmul.f32 %v73, %v118
  %v167 = vmul.f32 %v74, %v106
  %v168 = vmul.f32 %v75, %v110
  %v169 = vmul.f32 %v76, %v114
  %v170 = vmul.f32 %v77, %v118
  %v171 = vmul.f32 %v78, %v106
  %v172 = vmul.f32 %v79, %v110
  %v173 = vmul.f32 %v80, %v114
  %v174 = vmul.f32 %v81, %v118
  %v175 = vmul.f32 %v82, %v106
  %v176 = vmul.f32 %v83, %v110
  %v177 = vmul.f32 %v84, %v114
  %v178 = vmul.f32 %v85, %v118
  %v179 = vmul.f32 %v86, %v106
  %v180 = vmul.f32 %v87, %v110
  %v181 = vmul.f32 %v88, %v114
  %v182 = vmul.f32 %v89, %v118
  %v183 = vmul.f32 %v90, %v106
  %v184 = vmul.f32 %v91, %v110
  %v185 = vmul.f32 %v92, %v114
  %v186 = vmul.f32 %v93, %v118
  %v187 = vmul.f32 %v94, %v106
  %v188 = vmul.f32 %v95, %v110
  %v189 = vmul.f32 %v96, %v114
  %v190 = vmul.f32 %v97, %v118
  %v191 = vmul.f32 %v98, %v106
  %v192 = vmul.f32 %v99, %v110
  %v193 = vmul.f32 %v100, %v114
  %v194 = vmul.f32 %v101, %v118
  %v195 = vld [vmem:[%s0] sm:$0xff]
  %v196 = vld [vmem:[%s0 + $0x8] sm:$0xff]
  %v197 = vld [vmem:[%s0 + $0x10] sm:$0xff]
  %v198 = vld [vmem:[%s0 + $0x18] sm:$0xff]
  %v199 = vld [vmem:[%s0 + $0x20] sm:$0xff]
  %v200 = vld [vmem:[%s0 + $0x28] sm:$0xff]
  %v201 = vld [vmem:[%s0 + $0x30] sm:$0xff]
  %v202 = vld [vmem:[%s0 + $0x38] sm:$0xff]
  %v203 = vld [vmem:[%s0 + $0x40] sm:$0xff]
  %v204 = vld [vmem:[%s0 + $0x48] sm:$0xff]
  %v205 = vld [vmem:[%s0 + $0x50] sm:$0xff]
  %v206 = vld [vmem:[%s0 + $0x58] sm:$0xff]
  %v207 = vld [vmem:[%s0 + $0x60] sm:$0xff]
  %v208 = vld [vmem:[%s0 + $0x68] sm:$0xff]
  %v209 = vld [vmem:[%s0 + $0x70] sm:$0xff]
  %v210 = vld [vmem:[%s0 + $0x78] sm:$0xff]
  %v211 = vld [vmem:[%s0 + $0x80] sm:$0xff]
  %v212 = vld [vmem:[%s0 + $0x88] sm:$0xff]
  %v213 = vld [vmem:[%s0 + $0x90] sm:$0xff]
  %v214 = vld [vmem:[%s0 + $0x98] sm:$0xff]
  %v215 = vld [vmem:[%s0 + $0xa0] sm:$0xff]
  %v216 = vld [vmem:[%s0 + $0xa8] sm:$0xff]
  %v217 = vld [vmem:[%s0 + $0xb0] sm:$0xff]
  %v218 = vld [vmem:[%s0 + $0xb8] sm:$0xff]
  %v219 = vld [vmem:[%s0 + $0xc0] sm:$0xff]
  %v220 = vld [vmem:[%s0 + $0xc8] sm:$0xff]
  %v221 = vld [vmem:[%s0 + $0xd0] sm:$0xff]
  %v222 = vld [vmem:[%s0 + $0xd8] sm:$0xff]
  %v223 = vld [vmem:[%s0 + $0xe0] sm:$0xff]
  %v224 = vld [vmem:[%s0 + $0xe8] sm:$0xff]
  %v225 = vld [vmem:[%s0 + $0xf0] sm:$0xff]
  %v226 = vld [vmem:[%s0 + $0xf8] sm:$0xff]
  %v227 = vld [vmem:[%s0 + $0x100] sm:$0xff]
  %v228 = vld [vmem:[%s0 + $0x108] sm:$0xff]
  %v229 = vld [vmem:[%s0 + $0x110] sm:$0xff]
  %v230 = vld [vmem:[%s0 + $0x118] sm:$0xff]
  %v231 = vld [vmem:[%s0 + $0x120] sm:$0xff]
  %v232 = vld [vmem:[%s0 + $0x128] sm:$0xff]
  %v233 = vld [vmem:[%s0 + $0x130] sm:$0xff]
  %v234 = vld [vmem:[%s0 + $0x138] sm:$0xff]
  %v235 = vld [vmem:[%s0 + $0x140] sm:$0xff]
  %v236 = vld [vmem:[%s0 + $0x148] sm:$0xff]
  %v237 = vld [vmem:[%s0 + $0x150] sm:$0xff]
  %v238 = vld [vmem:[%s0 + $0x158] sm:$0xff]
  %v239 = vld [vmem:[%s0 + $0x160] sm:$0xff]
  %v240 = vld [vmem:[%s0 + $0x168] sm:$0xff]
  %v241 = vld [vmem:[%s0 + $0x170] sm:$0xff]
  %v242 = vld [vmem:[%s0 + $0x178] sm:$0xff]
  %v243 = vld [vmem:[%s0 + $0x180] sm:$0xff]
  %v244 = vld [vmem:[%s0 + $0x188] sm:$0xff]
  %v245 = vld [vmem:[%s0 + $0x190] sm:$0xff]
  %v246 = vld [vmem:[%s0 + $0x198] sm:$0xff]
  %v247 = vld [vmem:[%s0 + $0x1a0] sm:$0xff]
  %v248 = vld [vmem:[%s0 + $0x1a8] sm:$0xff]
  %v249 = vld [vmem:[%s0 + $0x1b0] sm:$0xff]
  %v250 = vld [vmem:[%s0 + $0x1b8] sm:$0xff]
  %v251 = vld [vmem:[%s0 + $0x1c0] sm:$0xff]
  %v252 = vld [vmem:[%s0 + $0x1c8] sm:$0xff]
  %v253 = vld [vmem:[%s0 + $0x1d0] sm:$0xff]
  %v254 = vld [vmem:[%s0 + $0x1d8] sm:$0xff]
  %v255 = vld [vmem:[%s0 + $0x1e0] sm:$0xff]
  %v256 = vld [vmem:[%s0 + $0x1e8] sm:$0xff]
  %v257 = vld [vmem:[%s0 + $0x1f0] sm:$0xff]
  %v258 = vld [vmem:[%s0 + $0x1f8] sm:$0xff]
  %v259 = vld [vmem:[%s0 + $0x200] sm:$0xff]
  %v260 = vld [vmem:[%s0 + $0x208] sm:$0xff]
  %v261 = vld [vmem:[%s0 + $0x210] sm:$0xff]
  %v262 = vld [vmem:[%s0 + $0x218] sm:$0xff]
  %v263 = vld [vmem:[%s0 + $0x220] sm:$0xff]
  %v264 = vld [vmem:[%s0 + $0x228] sm:$0xff]
  %v265 = vld [vmem:[%s0 + $0x230] sm:$0xff]
  %v266 = vld [vmem:[%s0 + $0x238] sm:$0xff]
  %v267 = vld [vmem:[%s0 + $0x240] sm:$0xff]
  %v268 = vld [vmem:[%s0 + $0x248] sm:$0xff]
  %v269 = vld [vmem:[%s0 + $0x250] sm:$0xff]
  %v270 = vld [vmem:[%s0 + $0x258] sm:$0xff]
  %v271 = vld [vmem:[%s0 + $0x260] sm:$0xff]
  %v272 = vld [vmem:[%s0 + $0x268] sm:$0xff]
  %v273 = vld [vmem:[%s0 + $0x270] sm:$0xff]
  %v274 = vld [vmem:[%s0 + $0x278] sm:$0xff]
  %v275 = vld [vmem:[%s0 + $0x280] sm:$0xff]
  %v276 = vld [vmem:[%s0 + $0x288] sm:$0xff]
  %v277 = vld [vmem:[%s0 + $0x290] sm:$0xff]
  %v278 = vld [vmem:[%s0 + $0x298] sm:$0xff]
  %v279 = vld [vmem:[%s0 + $0x2a0] sm:$0xff]
  %v280 = vld [vmem:[%s0 + $0x2a8] sm:$0xff]
  %v281 = vld [vmem:[%s0 + $0x2b0] sm:$0xff]
  %v282 = vld [vmem:[%s0 + $0x2b8] sm:$0xff]
  %v283 = vld [vmem:[%s0 + $0x2c0] sm:$0xff]
  %v284 = vld [vmem:[%s0 + $0x2c8] sm:$0xff]
  %v285 = vld [vmem:[%s0 + $0x2d0] sm:$0xff]
  %v286 = vld [vmem:[%s0 + $0x2d8] sm:$0xff]
  %v287 = vld [vmem:[%s0 + $0x2e0] sm:$0xff]
  %v288 = vld [vmem:[%s0 + $0x2e8] sm:$0xff]
  %v289 = vld [vmem:[%s0 + $0x2f0] sm:$0xff]
  %v290 = vld [vmem:[%s0 + $0x2f8] sm:$0xff]
  %v291 = vld [vmem:[%s0 + $0x300] sm:$0xff]
  %v292 = vld [vmem:[%s0 + $0x308] sm:$0xff]
  %v293 = vld [vmem:[%s0 + $0x310] sm:$0xff]
  %v294 = vld [vmem:[%s0 + $0x318] sm:$0xff]
  %v295 = vld [vmem:[%s0 + $0x320] sm:$0xff]
  %v296 = vld [vmem:[%s0 + $0x328] sm:$0xff]
  %v297 = vld [vmem:[%s0 + $0x330] sm:$0xff]
  %v298 = vld [vmem:[%s0 + $0x338] sm:$0xff]
  %v299 = vld [vmem:[%s0 + $0x340] sm:$0xff]
  %v300 = vld [vmem:[%s0 + $0x348] sm:$0xff]
  %v301 = vld [vmem:[%s0 + $0x350] sm:$0xff]
  %v302 = vld [vmem:[%s0 + $0x358] sm:$0xff]
  %vm303 = vcmask 392192
  %v305 = vsel %vm303, %v126, 0
  %v308 = vsel %vm303, %v130, 0
  %v311 = vsel %vm303, %v134, 0
  %v314 = vsel %vm303, %v138, 0
  %v317 = vsel %vm303, %v142, 0
  %v320 = vsel %vm303, %v146, 0
  %v323 = vsel %vm303, %v150, 0
  %v326 = vsel %vm303, %v154, 0
  %v329 = vsel %vm303, %v158, 0
  %v332 = vsel %vm303, %v162, 0
  %v335 = vsel %vm303, %v166, 0
  %v338 = vsel %vm303, %v170, 0
  %v341 = vsel %vm303, %v174, 0
  %v344 = vsel %vm303, %v178, 0
  %v347 = vsel %vm303, %v182, 0
  %v350 = vsel %vm303, %v186, 0
  %v353 = vsel %vm303, %v190, 0
  %v356 = vsel %vm303, %v194, 0
  %358 = vmatprep.subr.mxu0 %v226
  %359 = vmatpush1.msra.mxu0 %v225
  %360 = vmatprep.subr.mxu0 %v224
  %361 = vmatpush1.msra.mxu0 %v223
  %362 = vmatprep.subr.mxu0 %v222
  %363 = vmatpush1.msra.mxu0 %v221
  %364 = vmatprep.subr.mxu0 %v220
  %365 = vmatpush1.msra.mxu0 %v219
  %366 = vmatprep.subr.mxu0 %v218
  %367 = vmatpush1.msra.mxu0 %v217
  %368 = vmatprep.subr.mxu0 %v216
  %369 = vmatpush1.msra.mxu0 %v215
  %370 = vmatprep.subr.mxu0 %v214
  %371 = vmatpush1.msra.mxu0 %v213
  %372 = vmatprep.subr.mxu0 %v212
  %373 = vmatpush1.msra.mxu0 %v211
  %374 = vmatprep.subr.mxu0 %v210
  %375 = vmatpush1.msra.mxu0 %v209
  %376 = vmatprep.subr.mxu0 %v208
  %377 = vmatpush1.msra.mxu0 %v207
  %378 = vmatprep.subr.mxu0 %v206
  %379 = vmatpush1.msra.mxu0 %v205
  %380 = vmatprep.subr.mxu0 %v204
  %381 = vmatpush1.msra.mxu0 %v203
  %382 = vmatprep.subr.mxu0 %v202
  %383 = vmatpush1.msra.mxu0 %v201
  %384 = vmatprep.subr.mxu0 %v200
  %385 = vmatpush1.msra.mxu0 %v199
  %386 = vmatprep.subr.mxu0 %v198
  %387 = vmatpush1.msra.mxu0 %v197
  %388 = vmatprep.subr.mxu0 %v196
  %389 = vmatpush1.msra.mxu0 %v195
  %390 = vmatprep.subr.mxu0 %v258
  %391 = vmatpush2.msra.mxu0 %v257
  %392 = vmatprep.subr.mxu0 %v256
  %393 = vmatpush2.msra.mxu0 %v255
  %394 = vmatprep.subr.mxu0 %v254
  %395 = vmatpush2.msra.mxu0 %v253
  %396 = vmatprep.subr.mxu0 %v252
  %397 = vmatpush2.msra.mxu0 %v251
  %398 = vmatprep.subr.mxu0 %v250
  %399 = vmatpush2.msra.mxu0 %v249
  %400 = vmatprep.subr.mxu0 %v248
  %401 = vmatpush2.msra.mxu0 %v247
  %402 = vmatprep.subr.mxu0 %v246
  %403 = vmatpush2.msra.mxu0 %v245
  %404 = vmatprep.subr.mxu0 %v244
  %405 = vmatpush2.msra.mxu0 %v243
  %406 = vmatprep.subr.mxu0 %v242
  %407 = vmatpush2.msra.mxu0 %v241
  %408 = vmatprep.subr.mxu0 %v240
  %409 = vmatpush2.msra.mxu0 %v239
  %410 = vmatprep.subr.mxu0 %v238
  %411 = vmatpush2.msra.mxu0 %v237
  %412 = vmatprep.subr.mxu0 %v236
  %413 = vmatpush2.msra.mxu0 %v235
  %414 = vmatprep.subr.mxu0 %v234
  %415 = vmatpush2.msra.mxu0 %v233
  %416 = vmatprep.subr.mxu0 %v232
  %417 = vmatpush2.msra.mxu0 %v231
  %418 = vmatprep.subr.mxu0 %v230
  %419 = vmatpush2.msra.mxu0 %v229
  %420 = vmatprep.subr.mxu0 %v228
  %421 = vmatpush2.msra.mxu0 %v227
  %422 = vmatprep.mubr.f32.mxu0 %v124
  %423 = vmatmul.mubr.f32.gmra.mxu0 %v123
  %v424 = vpop.f32.mrf.mxu0
  %v425 = vadd.f32 0.0, %v424
  %v426 = vpop.f32.mrf.mxu0
  %v427 = vadd.f32 0.0, %v426
  %428 = vmatprep.mubr.f32.mxu0 %v128
  %429 = vmatmul.mubr.f32.gmra.mxu0 %v127
  %v430 = vpop.f32.mrf.mxu0
  %v431 = vadd.f32 0.0, %v430
  %v432 = vpop.f32.mrf.mxu0
  %v433 = vadd.f32 0.0, %v432
  %434 = vmatprep.mubr.f32.mxu0 %v132
  %435 = vmatmul.mubr.f32.gmra.mxu0 %v131
  %v436 = vpop.f32.mrf.mxu0
  %v437 = vadd.f32 0.0, %v436
  %v438 = vpop.f32.mrf.mxu0
  %v439 = vadd.f32 0.0, %v438
  %440 = vmatprep.mubr.f32.mxu0 %v136
  %441 = vmatmul.mubr.f32.gmra.mxu0 %v135
  %v442 = vpop.f32.mrf.mxu0
  %v443 = vadd.f32 0.0, %v442
  %v444 = vpop.f32.mrf.mxu0
  %v445 = vadd.f32 0.0, %v444
  %446 = vmatprep.mubr.f32.mxu0 %v140
  %447 = vmatmul.mubr.f32.gmra.mxu0 %v139
  %v448 = vpop.f32.mrf.mxu0
  %v449 = vadd.f32 0.0, %v448
  %v450 = vpop.f32.mrf.mxu0
  %v451 = vadd.f32 0.0, %v450
  %452 = vmatprep.mubr.f32.mxu0 %v144
  %453 = vmatmul.mubr.f32.gmra.mxu0 %v143
  %v454 = vpop.f32.mrf.mxu0
  %v455 = vadd.f32 0.0, %v454
  %v456 = vpop.f32.mrf.mxu0
  %v457 = vadd.f32 0.0, %v456
  %458 = vmatprep.mubr.f32.mxu0 %v148
  %459 = vmatmul.mubr.f32.gmra.mxu0 %v147
  %v460 = vpop.f32.mrf.mxu0
  %v461 = vadd.f32 0.0, %v460
  %v462 = vpop.f32.mrf.mxu0
  %v463 = vadd.f32 0.0, %v462
  %464 = vmatprep.mubr.f32.mxu0 %v152
  %465 = vmatmul.mubr.f32.gmra.mxu0 %v151
  %v466 = vpop.f32.mrf.mxu0
  %v467 = vadd.f32 0.0, %v466
  %v468 = vpop.f32.mrf.mxu0
  %v469 = vadd.f32 0.0, %v468
  %470 = vmatprep.mubr.f32.mxu0 %v156
  %471 = vmatmul.mubr.f32.gmra.mxu0 %v155
  %v472 = vpop.f32.mrf.mxu0
  %v473 = vadd.f32 0.0, %v472
  %v474 = vpop.f32.mrf.mxu0
  %v475 = vadd.f32 0.0, %v474
  %476 = vmatprep.mubr.f32.mxu0 %v160
  %477 = vmatmul.mubr.f32.gmra.mxu0 %v159
  %v478 = vpop.f32.mrf.mxu0
  %v479 = vadd.f32 0.0, %v478
  %v480 = vpop.f32.mrf.mxu0
  %v481 = vadd.f32 0.0, %v480
  %482 = vmatprep.mubr.f32.mxu0 %v164
  %483 = vmatmul.mubr.f32.gmra.mxu0 %v163
  %v484 = vpop.f32.mrf.mxu0
  %v485 = vadd.f32 0.0, %v484
  %v486 = vpop.f32.mrf.mxu0
  %v487 = vadd.f32 0.0, %v486
  %488 = vmatprep.mubr.f32.mxu0 %v168
  %489 = vmatmul.mubr.f32.gmra.mxu0 %v167
  %v490 = vpop.f32.mrf.mxu0
  %v491 = vadd.f32 0.0, %v490
  %v492 = vpop.f32.mrf.mxu0
  %v493 = vadd.f32 0.0, %v492
  %494 = vmatprep.mubr.f32.mxu0 %v172
  %495 = vmatmul.mubr.f32.gmra.mxu0 %v171
  %v496 = vpop.f32.mrf.mxu0
  %v497 = vadd.f32 0.0, %v496
  %v498 = vpop.f32.mrf.mxu0
  %v499 = vadd.f32 0.0, %v498
  %500 = vmatprep.mubr.f32.mxu0 %v176
  %501 = vmatmul.mubr.f32.gmra.mxu0 %v175
  %v502 = vpop.f32.mrf.mxu0
  %v503 = vadd.f32 0.0, %v502
  %v504 = vpop.f32.mrf.mxu0
  %v505 = vadd.f32 0.0, %v504
  %506 = vmatprep.mubr.f32.mxu0 %v180
  %507 = vmatmul.mubr.f32.gmra.mxu0 %v179
  %v508 = vpop.f32.mrf.mxu0
  %v509 = vadd.f32 0.0, %v508
  %v510 = vpop.f32.mrf.mxu0
  %v511 = vadd.f32 0.0, %v510
  %512 = vmatprep.mubr.f32.mxu0 %v184
  %513 = vmatmul.mubr.f32.gmra.mxu0 %v183
  %v514 = vpop.f32.mrf.mxu0
  %v515 = vadd.f32 0.0, %v514
  %v516 = vpop.f32.mrf.mxu0
  %v517 = vadd.f32 0.0, %v516
  %518 = vmatprep.mubr.f32.mxu0 %v188
  %519 = vmatmul.mubr.f32.gmra.mxu0 %v187
  %v520 = vpop.f32.mrf.mxu0
  %v521 = vadd.f32 0.0, %v520
  %v522 = vpop.f32.mrf.mxu0
  %v523 = vadd.f32 0.0, %v522
  %524 = vmatprep.mubr.f32.mxu0 %v192
  %525 = vmatmul.mubr.f32.gmra.mxu0 %v191
  %v526 = vpop.f32.mrf.mxu0
  %v527 = vadd.f32 0.0, %v526
  %v528 = vpop.f32.mrf.mxu0
  %v529 = vadd.f32 0.0, %v528
  %530 = vdwg.mxu0
  %531 = vmatprep.subr.mxu0 %v290
  %532 = vmatpush1.msra.mxu0 %v289
  %533 = vmatprep.subr.mxu0 %v288
  %534 = vmatpush1.msra.mxu0 %v287
  %535 = vmatprep.subr.mxu0 %v286
  %536 = vmatpush1.msra.mxu0 %v285
  %537 = vmatprep.subr.mxu0 %v284
  %538 = vmatpush1.msra.mxu0 %v283
  %539 = vmatprep.subr.mxu0 %v282
  %540 = vmatpush1.msra.mxu0 %v281
  %541 = vmatprep.subr.mxu0 %v280
  %542 = vmatpush1.msra.mxu0 %v279
  %543 = vmatprep.subr.mxu0 %v278
  %544 = vmatpush1.msra.mxu0 %v277
  %545 = vmatprep.subr.mxu0 %v276
  %546 = vmatpush1.msra.mxu0 %v275
  %547 = vmatprep.subr.mxu0 %v274
  %548 = vmatpush1.msra.mxu0 %v273
  %549 = vmatprep.subr.mxu0 %v272
  %550 = vmatpush1.msra.mxu0 %v271
  %551 = vmatprep.subr.mxu0 %v270
  %552 = vmatpush1.msra.mxu0 %v269
  %553 = vmatprep.subr.mxu0 %v268
  %554 = vmatpush1.msra.mxu0 %v267
  %555 = vmatprep.subr.mxu0 %v266
  %556 = vmatpush1.msra.mxu0 %v265
  %557 = vmatprep.subr.mxu0 %v264
  %558 = vmatpush1.msra.mxu0 %v263
  %559 = vmatprep.subr.mxu0 %v262
  %560 = vmatpush1.msra.mxu0 %v261
  %561 = vmatprep.subr.mxu0 %v260
  %562 = vmatpush1.msra.mxu0 %v259
  %563 = vmatprep.subr.mxu0 0.0
  %564 = vmatpush2.msra.mxu0 0.0
  %565 = vmatprep.subr.mxu0 0.0
  %566 = vmatpush2.msra.mxu0 0.0
  %567 = vmatprep.subr.mxu0 0.0
  %568 = vmatpush2.msra.mxu0 0.0
  %569 = vmatprep.subr.mxu0 0.0
  %570 = vmatpush2.msra.mxu0 0.0
  %571 = vmatprep.subr.mxu0 0.0
  %572 = vmatpush2.msra.mxu0 0.0
  %573 = vmatprep.subr.mxu0 0.0
  %574 = vmatpush2.msra.mxu0 0.0
  %575 = vmatprep.subr.mxu0 0.0
  %576 = vmatpush2.msra.mxu0 0.0
  %577 = vmatprep.subr.mxu0 0.0
  %578 = vmatpush2.msra.mxu0 0.0
  %579 = vmatprep.subr.mxu0 0.0
  %580 = vmatpush2.msra.mxu0 0.0
  %581 = vmatprep.subr.mxu0 0.0
  %582 = vmatpush2.msra.mxu0 0.0
  %583 = vmatprep.subr.mxu0 %v302
  %584 = vmatpush2.msra.mxu0 %v301
  %585 = vmatprep.subr.mxu0 %v300
  %586 = vmatpush2.msra.mxu0 %v299
  %587 = vmatprep.subr.mxu0 %v298
  %588 = vmatpush2.msra.mxu0 %v297
  %589 = vmatprep.subr.mxu0 %v296
  %590 = vmatpush2.msra.mxu0 %v295
  %591 = vmatprep.subr.mxu0 %v294
  %592 = vmatpush2.msra.mxu0 %v293
  %593 = vmatprep.subr.mxu0 %v292
  %594 = vmatpush2.msra.mxu0 %v291
  %595 = vmatprep.mubr.f32.mxu0 %v305
  %596 = vmatmul.mubr.f32.gmra.mxu0 %v125
  %v597 = vpop.f32.mrf.mxu0
  %v598 = vadd.f32 %v425, %v597
  %v599 = vpop.f32.mrf.mxu0
  %v600 = vadd.f32 %v427, %v599
  %601 = vmatprep.mubr.f32.mxu0 %v308
  %602 = vmatmul.mubr.f32.gmra.mxu0 %v129
  %v603 = vpop.f32.mrf.mxu0
  %v604 = vadd.f32 %v431, %v603
  %v605 = vpop.f32.mrf.mxu0
  %v606 = vadd.f32 %v433, %v605
  %607 = vmatprep.mubr.f32.mxu0 %v311
  %608 = vmatmul.mubr.f32.gmra.mxu0 %v133
  %v609 = vpop.f32.mrf.mxu0
  %v610 = vadd.f32 %v437, %v609
  %v611 = vpop.f32.mrf.mxu0
  %v612 = vadd.f32 %v439, %v611
  %613 = vmatprep.mubr.f32.mxu0 %v314
  %614 = vmatmul.mubr.f32.gmra.mxu0 %v137
  %v615 = vpop.f32.mrf.mxu0
  %v616 = vadd.f32 %v443, %v615
  %v617 = vpop.f32.mrf.mxu0
  %v618 = vadd.f32 %v445, %v617
  %619 = vmatprep.mubr.f32.mxu0 %v317
  %620 = vmatmul.mubr.f32.gmra.mxu0 %v141
  %v621 = vpop.f32.mrf.mxu0
  %v622 = vadd.f32 %v449, %v621
  %v623 = vpop.f32.mrf.mxu0
  %v624 = vadd.f32 %v451, %v623
  %625 = vmatprep.mubr.f32.mxu0 %v320
  %626 = vmatmul.mubr.f32.gmra.mxu0 %v145
  %v627 = vpop.f32.mrf.mxu0
  %v628 = vadd.f32 %v455, %v627
  %v629 = vpop.f32.mrf.mxu0
  %v630 = vadd.f32 %v457, %v629
  %631 = vmatprep.mubr.f32.mxu0 %v323
  %632 = vmatmul.mubr.f32.gmra.mxu0 %v149
  %v633 = vpop.f32.mrf.mxu0
  %v634 = vadd.f32 %v461, %v633
  %v635 = vpop.f32.mrf.mxu0
  %v636 = vadd.f32 %v463, %v635
  %637 = vmatprep.mubr.f32.mxu0 %v326
  %638 = vmatmul.mubr.f32.gmra.mxu0 %v153
  %v639 = vpop.f32.mrf.mxu0
  %v640 = vadd.f32 %v467, %v639
  %v641 = vpop.f32.mrf.mxu0
  %v642 = vadd.f32 %v469, %v641
  %643 = vmatprep.mubr.f32.mxu0 %v329
  %644 = vmatmul.mubr.f32.gmra.mxu0 %v157
  %v645 = vpop.f32.mrf.mxu0
  %v646 = vadd.f32 %v473, %v645
  %v647 = vpop.f32.mrf.mxu0
  %v648 = vadd.f32 %v475, %v647
  %649 = vmatprep.mubr.f32.mxu0 %v332
  %650 = vmatmul.mubr.f32.gmra.mxu0 %v161
  %v651 = vpop.f32.mrf.mxu0
  %v652 = vadd.f32 %v479, %v651
  %v653 = vpop.f32.mrf.mxu0
  %v654 = vadd.f32 %v481, %v653
  %655 = vmatprep.mubr.f32.mxu0 %v335
  %656 = vmatmul.mubr.f32.gmra.mxu0 %v165
  %v657 = vpop.f32.mrf.mxu0
  %v658 = vadd.f32 %v485, %v657
  %v659 = vpop.f32.mrf.mxu0
  %v660 = vadd.f32 %v487, %v659
  %661 = vmatprep.mubr.f32.mxu0 %v338
  %662 = vmatmul.mubr.f32.gmra.mxu0 %v169
  %v663 = vpop.f32.mrf.mxu0
  %v664 = vadd.f32 %v491, %v663
  %v665 = vpop.f32.mrf.mxu0
  %v666 = vadd.f32 %v493, %v665
  %667 = vmatprep.mubr.f32.mxu0 %v341
  %668 = vmatmul.mubr.f32.gmra.mxu0 %v173
  %v669 = vpop.f32.mrf.mxu0
  %v670 = vadd.f32 %v497, %v669
  %v671 = vpop.f32.mrf.mxu0
  %v672 = vadd.f32 %v499, %v671
  %673 = vmatprep.mubr.f32.mxu0 %v344
  %674 = vmatmul.mubr.f32.gmra.mxu0 %v177
  %v675 = vpop.f32.mrf.mxu0
  %v676 = vadd.f32 %v503, %v675
  %v677 = vpop.f32.mrf.mxu0
  %v678 = vadd.f32 %v505, %v677
  %679 = vmatprep.mubr.f32.mxu0 %v347
  %680 = vmatmul.mubr.f32.gmra.mxu0 %v181
  %v681 = vpop.f32.mrf.mxu0
  %v682 = vadd.f32 %v509, %v681
  %v683 = vpop.f32.mrf.mxu0
  %v684 = vadd.f32 %v511, %v683
  %685 = vmatprep.mubr.f32.mxu0 %v350
  %686 = vmatmul.mubr.f32.gmra.mxu0 %v185
  %v687 = vpop.f32.mrf.mxu0
  %v688 = vadd.f32 %v515, %v687
  %v689 = vpop.f32.mrf.mxu0
  %v690 = vadd.f32 %v517, %v689
  %691 = vmatprep.mubr.f32.mxu0 %v353
  %692 = vmatmul.mubr.f32.gmra.mxu0 %v189
  %v693 = vpop.f32.mrf.mxu0
  %v694 = vadd.f32 %v521, %v693
  %v695 = vpop.f32.mrf.mxu0
  %v696 = vadd.f32 %v523, %v695
  %697 = vmatprep.mubr.f32.mxu0 %v356
  %698 = vmatmul.mubr.f32.gmra.mxu0 %v193
  %v699 = vpop.f32.mrf.mxu0
  %v700 = vadd.f32 %v527, %v699
  %v701 = vpop.f32.mrf.mxu0
  %v702 = vadd.f32 %v529, %v701
  %703 = vdwg.mxu0
  %vm704 = vcmask 556032
  %v705 = vsel %vm704, %v600, 0.0
  %v706 = vadd.f32 %v598, %v705
  %707 = vadd.xlane.f32.xlu0 %v706
  %v708 = vpop.xlane.xlu0 %707
  %v709 = vsel %vm704, %v606, 0.0
  %v710 = vadd.f32 %v604, %v709
  %711 = vadd.xlane.f32.xlu0 %v710
  %v712 = vpop.xlane.xlu0 %711
  %v713 = vsel %vm704, %v612, 0.0
  %v714 = vadd.f32 %v610, %v713
  %715 = vadd.xlane.f32.xlu0 %v714
  %v716 = vpop.xlane.xlu0 %715
  %v717 = vsel %vm704, %v618, 0.0
  %v718 = vadd.f32 %v616, %v717
  %719 = vadd.xlane.f32.xlu0 %v718
  %v720 = vpop.xlane.xlu0 %719
  %v721 = vsel %vm704, %v624, 0.0
  %v722 = vadd.f32 %v622, %v721
  %723 = vadd.xlane.f32.xlu0 %v722
  %v724 = vpop.xlane.xlu0 %723
  %v725 = vsel %vm704, %v630, 0.0
  %v726 = vadd.f32 %v628, %v725
  %727 = vadd.xlane.f32.xlu0 %v726
  %v728 = vpop.xlane.xlu0 %727
  %v729 = vsel %vm704, %v636, 0.0
  %v730 = vadd.f32 %v634, %v729
  %731 = vadd.xlane.f32.xlu0 %v730
  %v732 = vpop.xlane.xlu0 %731
  %v733 = vsel %vm704, %v642, 0.0
  %v734 = vadd.f32 %v640, %v733
  %735 = vadd.xlane.f32.xlu0 %v734
  %v736 = vpop.xlane.xlu0 %735
  %v737 = vsel %vm704, %v648, 0.0
  %v738 = vadd.f32 %v646, %v737
  %739 = vadd.xlane.f32.xlu0 %v738
  %v740 = vpop.xlane.xlu0 %739
  %v741 = vsel %vm704, %v654, 0.0
  %v742 = vadd.f32 %v652, %v741
  %743 = vadd.xlane.f32.xlu0 %v742
  %v744 = vpop.xlane.xlu0 %743
  %v745 = vsel %vm704, %v660, 0.0
  %v746 = vadd.f32 %v658, %v745
  %747 = vadd.xlane.f32.xlu0 %v746
  %v748 = vpop.xlane.xlu0 %747
  %v749 = vsel %vm704, %v666, 0.0
  %v750 = vadd.f32 %v664, %v749
  %751 = vadd.xlane.f32.xlu0 %v750
  %v752 = vpop.xlane.xlu0 %751
  %v753 = vsel %vm704, %v672, 0.0
  %v754 = vadd.f32 %v670, %v753
  %755 = vadd.xlane.f32.xlu0 %v754
  %v756 = vpop.xlane.xlu0 %755
  %v757 = vsel %vm704, %v678, 0.0
  %v758 = vadd.f32 %v676, %v757
  %759 = vadd.xlane.f32.xlu0 %v758
  %v760 = vpop.xlane.xlu0 %759
  %v761 = vsel %vm704, %v684, 0.0
  %v762 = vadd.f32 %v682, %v761
  %763 = vadd.xlane.f32.xlu0 %v762
  %v764 = vpop.xlane.xlu0 %763
  %v765 = vsel %vm704, %v690, 0.0
  %v766 = vadd.f32 %v688, %v765
  %767 = vadd.xlane.f32.xlu0 %v766
  %v768 = vpop.xlane.xlu0 %767
  %v769 = vsel %vm704, %v696, 0.0
  %v770 = vadd.f32 %v694, %v769
  %771 = vadd.xlane.f32.xlu0 %v770
  %v772 = vpop.xlane.xlu0 %771
  %v773 = vsel %vm704, %v702, 0.0
  %v774 = vadd.f32 %v700, %v773
  %775 = vadd.xlane.f32.xlu0 %v774
  %v776 = vpop.xlane.xlu0 %775
  %v777 = vmul.f32 %v598, %v598
  %v778 = vmul.f32 %v600, %v600
  %v779 = vmul.f32 %v604, %v604
  %v780 = vmul.f32 %v606, %v606
  %v781 = vmul.f32 %v610, %v610
  %v782 = vmul.f32 %v612, %v612
  %v783 = vmul.f32 %v616, %v616
  %v784 = vmul.f32 %v618, %v618
  %v785 = vmul.f32 %v622, %v622
  %v786 = vmul.f32 %v624, %v624
  %v787 = vmul.f32 %v628, %v628
  %v788 = vmul.f32 %v630, %v630
  %v789 = vmul.f32 %v634, %v634
  %v790 = vmul.f32 %v636, %v636
  %v791 = vmul.f32 %v640, %v640
  %v792 = vmul.f32 %v642, %v642
  %v793 = vmul.f32 %v646, %v646
  %v794 = vmul.f32 %v648, %v648
  %v795 = vmul.f32 %v652, %v652
  %v796 = vmul.f32 %v654, %v654
  %v797 = vmul.f32 %v658, %v658
  %v798 = vmul.f32 %v660, %v660
  %v799 = vmul.f32 %v664, %v664
  %v800 = vmul.f32 %v666, %v666
  %v801 = vmul.f32 %v670, %v670
  %v802 = vmul.f32 %v672, %v672
  %v803 = vmul.f32 %v676, %v676
  %v804 = vmul.f32 %v678, %v678
  %v805 = vmul.f32 %v682, %v682
  %v806 = vmul.f32 %v684, %v684
  %v807 = vmul.f32 %v688, %v688
  %v808 = vmul.f32 %v690, %v690
  %v809 = vmul.f32 %v694, %v694
  %v810 = vmul.f32 %v696, %v696
  %v811 = vmul.f32 %v700, %v700
  %v812 = vmul.f32 %v702, %v702
  %v813 = vsel %vm704, %v778, 0.0
  %v814 = vadd.f32 %v777, %v813
  %815 = vadd.xlane.f32.xlu0 %v814
  %v816 = vpop.xlane.xlu0 %815
  %v817 = vsel %vm704, %v780, 0.0
  %v818 = vadd.f32 %v779, %v817
  %819 = vadd.xlane.f32.xlu0 %v818
  %v820 = vpop.xlane.xlu0 %819
  %v821 = vsel %vm704, %v782, 0.0
  %v822 = vadd.f32 %v781, %v821
  %823 = vadd.xlane.f32.xlu0 %v822
  %v824 = vpop.xlane.xlu0 %823
  %v825 = vsel %vm704, %v784, 0.0
  %v826 = vadd.f32 %v783, %v825
  %827 = vadd.xlane.f32.xlu0 %v826
  %v828 = vpop.xlane.xlu0 %827
  %v829 = vsel %vm704, %v786, 0.0
  %v830 = vadd.f32 %v785, %v829
  %831 = vadd.xlane.f32.xlu0 %v830
  %v832 = vpop.xlane.xlu0 %831
  %v833 = vsel %vm704, %v788, 0.0
  %v834 = vadd.f32 %v787, %v833
  %835 = vadd.xlane.f32.xlu0 %v834
  %v836 = vpop.xlane.xlu0 %835
  %v837 = vsel %vm704, %v790, 0.0
  %v838 = vadd.f32 %v789, %v837
  %839 = vadd.xlane.f32.xlu0 %v838
  %v840 = vpop.xlane.xlu0 %839
  %v841 = vsel %vm704, %v792, 0.0
  %v842 = vadd.f32 %v791, %v841
  %843 = vadd.xlane.f32.xlu0 %v842
  %v844 = vpop.xlane.xlu0 %843
  %v845 = vsel %vm704, %v794, 0.0
  %v846 = vadd.f32 %v793, %v845
  %847 = vadd.xlane.f32.xlu0 %v846
  %v848 = vpop.xlane.xlu0 %847
  %v849 = vsel %vm704, %v796, 0.0
  %v850 = vadd.f32 %v795, %v849
  %851 = vadd.xlane.f32.xlu0 %v850
  %v852 = vpop.xlane.xlu0 %851
  %v853 = vsel %vm704, %v798, 0.0
  %v854 = vadd.f32 %v797, %v853
  %855 = vadd.xlane.f32.xlu0 %v854
  %v856 = vpop.xlane.xlu0 %855
  %v857 = vsel %vm704, %v800, 0.0
  %v858 = vadd.f32 %v799, %v857
  %859 = vadd.xlane.f32.xlu0 %v858
  %v860 = vpop.xlane.xlu0 %859
  %v861 = vsel %vm704, %v802, 0.0
  %v862 = vadd.f32 %v801, %v861
  %863 = vadd.xlane.f32.xlu0 %v862
  %v864 = vpop.xlane.xlu0 %863
  %v865 = vsel %vm704, %v804, 0.0
  %v866 = vadd.f32 %v803, %v865
  %867 = vadd.xlane.f32.xlu0 %v866
  %v868 = vpop.xlane.xlu0 %867
  %v869 = vsel %vm704, %v806, 0.0
  %v870 = vadd.f32 %v805, %v869
  %871 = vadd.xlane.f32.xlu0 %v870
  %v872 = vpop.xlane.xlu0 %871
  %v873 = vsel %vm704, %v808, 0.0
  %v874 = vadd.f32 %v807, %v873
  %875 = vadd.xlane.f32.xlu0 %v874
  %v876 = vpop.xlane.xlu0 %875
  %v877 = vsel %vm704, %v810, 0.0
  %v878 = vadd.f32 %v809, %v877
  %879 = vadd.xlane.f32.xlu0 %v878
  %v880 = vpop.xlane.xlu0 %879
  %v881 = vsel %vm704, %v812, 0.0
  %v882 = vadd.f32 %v811, %v881
  %883 = vadd.xlane.f32.xlu0 %v882
  %v884 = vpop.xlane.xlu0 %883
  %v885 = vrcp.pop 196.0
  %v886 = vmul.f32 %v708, %v885
  %v887 = vmul.f32 %v712, %v885
  %v888 = vmul.f32 %v716, %v885
  %v889 = vmul.f32 %v720, %v885
  %v890 = vmul.f32 %v724, %v885
  %v891 = vmul.f32 %v728, %v885
  %v892 = vmul.f32 %v732, %v885
  %v893 = vmul.f32 %v736, %v885
  %v894 = vmul.f32 %v740, %v885
  %v895 = vmul.f32 %v744, %v885
  %v896 = vmul.f32 %v748, %v885
  %v897 = vmul.f32 %v752, %v885
  %v898 = vmul.f32 %v756, %v885
  %v899 = vmul.f32 %v760, %v885
  %v900 = vmul.f32 %v764, %v885
  %v901 = vmul.f32 %v768, %v885
  %v902 = vmul.f32 %v772, %v885
  %v903 = vmul.f32 %v776, %v885
  %v904 = vmul.f32 %v816, %v885
  %v905 = vmul.f32 %v820, %v885
  %v906 = vmul.f32 %v824, %v885
  %v907 = vmul.f32 %v828, %v885
  %v908 = vmul.f32 %v832, %v885
  %v909 = vmul.f32 %v836, %v885
  %v910 = vmul.f32 %v840, %v885
  %v911 = vmul.f32 %v844, %v885
  %v912 = vmul.f32 %v848, %v885
  %v913 = vmul.f32 %v852, %v885
  %v914 = vmul.f32 %v856, %v885
  %v915 = vmul.f32 %v860, %v885
  %v916 = vmul.f32 %v864, %v885
  %v917 = vmul.f32 %v868, %v885
  %v918 = vmul.f32 %v872, %v885
  %v919 = vmul.f32 %v876, %v885
  %v920 = vmul.f32 %v880, %v885
  %v921 = vmul.f32 %v884, %v885
  %v922 = vmul.f32 %v886, %v886
  %v923 = vmul.f32 %v887, %v887
  %v924 = vmul.f32 %v888, %v888
  %v925 = vmul.f32 %v889, %v889
  %v926 = vmul.f32 %v890, %v890
  %v927 = vmul.f32 %v891, %v891
  %v928 = vmul.f32 %v892, %v892
  %v929 = vmul.f32 %v893, %v893
  %v930 = vmul.f32 %v894, %v894
  %v931 = vmul.f32 %v895, %v895
  %v932 = vmul.f32 %v896, %v896
  %v933 = vmul.f32 %v897, %v897
  %v934 = vmul.f32 %v898, %v898
  %v935 = vmul.f32 %v899, %v899
  %v936 = vmul.f32 %v900, %v900
  %v937 = vmul.f32 %v901, %v901
  %v938 = vmul.f32 %v902, %v902
  %v939 = vmul.f32 %v903, %v903
  %v940 = vsub.f32 %v904, %v922
  %v941 = vsub.f32 %v905, %v923
  %v942 = vsub.f32 %v906, %v924
  %v943 = vsub.f32 %v907, %v925
  %v944 = vsub.f32 %v908, %v926
  %v945 = vsub.f32 %v909, %v927
  %v946 = vsub.f32 %v910, %v928
  %v947 = vsub.f32 %v911, %v929
  %v948 = vsub.f32 %v912, %v930
  %v949 = vsub.f32 %v913, %v931
  %v950 = vsub.f32 %v914, %v932
  %v951 = vsub.f32 %v915, %v933
  %v952 = vsub.f32 %v916, %v934
  %v953 = vsub.f32 %v917, %v935
  %v954 = vsub.f32 %v918, %v936
  %v955 = vsub.f32 %v919, %v937
  %v956 = vsub.f32 %v920, %v938
  %v957 = vsub.f32 %v921, %v939
  %v958 = vadd.f32 %v940, 0.001
  %v959 = vadd.f32 %v941, 0.001
  %v960 = vadd.f32 %v942, 0.001
  %v961 = vadd.f32 %v943, 0.001
  %v962 = vadd.f32 %v944, 0.001
  %v963 = vadd.f32 %v945, 0.001
  %v964 = vadd.f32 %v946, 0.001
  %v965 = vadd.f32 %v947, 0.001
  %v966 = vadd.f32 %v948, 0.001
  %v967 = vadd.f32 %v949, 0.001
  %v968 = vadd.f32 %v950, 0.001
  %v969 = vadd.f32 %v951, 0.001
  %v970 = vadd.f32 %v952, 0.001
  %v971 = vadd.f32 %v953, 0.001
  %v972 = vadd.f32 %v954, 0.001
  %v973 = vadd.f32 %v955, 0.001
  %v974 = vadd.f32 %v956, 0.001
  %v975 = vadd.f32 %v957, 0.001
  %v976 = vrsqrt.pop %v958
  %v977 = vrsqrt.pop %v959
  %v978 = vrsqrt.pop %v960
  %v979 = vrsqrt.pop %v961
  %v980 = vrsqrt.pop %v962
  %v981 = vrsqrt.pop %v963
  %v982 = vrsqrt.pop %v964
  %v983 = vrsqrt.pop %v965
  %v984 = vrsqrt.pop %v966
  %v985 = vrsqrt.pop %v967
  %v986 = vrsqrt.pop %v968
  %v987 = vrsqrt.pop %v969
  %v988 = vrsqrt.pop %v970
  %v989 = vrsqrt.pop %v971
  %v990 = vrsqrt.pop %v972
  %v991 = vrsqrt.pop %v973
  %v992 = vrsqrt.pop %v974
  %v993 = vrsqrt.pop %v975
  %v994 = vld [vmem:[%s3] sm:$0xff]
  %v995 = vld [vmem:[%s3 + $0x8] sm:$0xff]
  %v996 = vld [vmem:[%s3 + $0x10] sm:$0xff]
  %v997 = vld [vmem:[%s3 + $0x18] sm:$0xff]
  %v998 = vld [vmem:[%s3 + $0x20] sm:$0xff]
  %v999 = vld [vmem:[%s3 + $0x28] sm:$0xff]
  %v1000 = vld [vmem:[%s3 + $0x30] sm:$0xff]
  %v1001 = vld [vmem:[%s3 + $0x38] sm:$0xff]
  %v1002 = vld [vmem:[%s3 + $0x40] sm:$0xff]
  %v1003 = vld [vmem:[%s3 + $0x48] sm:$0xff]
  %v1004 = vld [vmem:[%s3 + $0x50] sm:$0xff]
  %v1005 = vld [vmem:[%s3 + $0x58] sm:$0xff]
  %v1006 = vld [vmem:[%s3 + $0x60] sm:$0xff]
  %v1007 = vld [vmem:[%s3 + $0x68] sm:$0xff]
  %v1008 = vld [vmem:[%s3 + $0x70] sm:$0xff]
  %v1009 = vld [vmem:[%s3 + $0x78] sm:$0xff]
  %v1010 = vld [vmem:[%s3 + $0x80] sm:$0xff]
  %v1011 = vld [vmem:[%s3 + $0x88] sm:$0xff]
  %v1012 = vmul.f32 %v976, %v994
  %v1013 = vmul.f32 %v977, %v995
  %v1014 = vmul.f32 %v978, %v996
  %v1015 = vmul.f32 %v979, %v997
  %v1016 = vmul.f32 %v980, %v998
  %v1017 = vmul.f32 %v981, %v999
  %v1018 = vmul.f32 %v982, %v1000
  %v1019 = vmul.f32 %v983, %v1001
  %v1020 = vmul.f32 %v984, %v1002
  %v1021 = vmul.f32 %v985, %v1003
  %v1022 = vmul.f32 %v986, %v1004
  %v1023 = vmul.f32 %v987, %v1005
  %v1024 = vmul.f32 %v988, %v1006
  %v1025 = vmul.f32 %v989, %v1007
  %v1026 = vmul.f32 %v990, %v1008
  %v1027 = vmul.f32 %v991, %v1009
  %v1028 = vmul.f32 %v992, %v1010
  %v1029 = vmul.f32 %v993, %v1011
  %v1030 = vld [vmem:[%s4] sm:$0xff]
  %v1031 = vld [vmem:[%s4 + $0x8] sm:$0xff]
  %v1032 = vld [vmem:[%s4 + $0x10] sm:$0xff]
  %v1033 = vld [vmem:[%s4 + $0x18] sm:$0xff]
  %v1034 = vld [vmem:[%s4 + $0x20] sm:$0xff]
  %v1035 = vld [vmem:[%s4 + $0x28] sm:$0xff]
  %v1036 = vld [vmem:[%s4 + $0x30] sm:$0xff]
  %v1037 = vld [vmem:[%s4 + $0x38] sm:$0xff]
  %v1038 = vld [vmem:[%s4 + $0x40] sm:$0xff]
  %v1039 = vld [vmem:[%s4 + $0x48] sm:$0xff]
  %v1040 = vld [vmem:[%s4 + $0x50] sm:$0xff]
  %v1041 = vld [vmem:[%s4 + $0x58] sm:$0xff]
  %v1042 = vld [vmem:[%s4 + $0x60] sm:$0xff]
  %v1043 = vld [vmem:[%s4 + $0x68] sm:$0xff]
  %v1044 = vld [vmem:[%s4 + $0x70] sm:$0xff]
  %v1045 = vld [vmem:[%s4 + $0x78] sm:$0xff]
  %v1046 = vld [vmem:[%s4 + $0x80] sm:$0xff]
  %v1047 = vld [vmem:[%s4 + $0x88] sm:$0xff]
  %v1048 = vmul.f32 %v886, %v1012
  %v1049 = vmul.f32 %v887, %v1013
  %v1050 = vmul.f32 %v888, %v1014
  %v1051 = vmul.f32 %v889, %v1015
  %v1052 = vmul.f32 %v890, %v1016
  %v1053 = vmul.f32 %v891, %v1017
  %v1054 = vmul.f32 %v892, %v1018
  %v1055 = vmul.f32 %v893, %v1019
  %v1056 = vmul.f32 %v894, %v1020
  %v1057 = vmul.f32 %v895, %v1021
  %v1058 = vmul.f32 %v896, %v1022
  %v1059 = vmul.f32 %v897, %v1023
  %v1060 = vmul.f32 %v898, %v1024
  %v1061 = vmul.f32 %v899, %v1025
  %v1062 = vmul.f32 %v900, %v1026
  %v1063 = vmul.f32 %v901, %v1027
  %v1064 = vmul.f32 %v902, %v1028
  %v1065 = vmul.f32 %v903, %v1029
  %v1066 = vsub.f32 %v1030, %v1048
  %v1067 = vsub.f32 %v1031, %v1049
  %v1068 = vsub.f32 %v1032, %v1050
  %v1069 = vsub.f32 %v1033, %v1051
  %v1070 = vsub.f32 %v1034, %v1052
  %v1071 = vsub.f32 %v1035, %v1053
  %v1072 = vsub.f32 %v1036, %v1054
  %v1073 = vsub.f32 %v1037, %v1055
  %v1074 = vsub.f32 %v1038, %v1056
  %v1075 = vsub.f32 %v1039, %v1057
  %v1076 = vsub.f32 %v1040, %v1058
  %v1077 = vsub.f32 %v1041, %v1059
  %v1078 = vsub.f32 %v1042, %v1060
  %v1079 = vsub.f32 %v1043, %v1061
  %v1080 = vsub.f32 %v1044, %v1062
  %v1081 = vsub.f32 %v1045, %v1063
  %v1082 = vsub.f32 %v1046, %v1064
  %v1083 = vsub.f32 %v1047, %v1065
  %1085 = vset.pattern.permute.xlu0 0
  %1086 = vperm.xlu0 %1085, %v1012
  %v1087 = vpop.permute.xlu0 %1086
  %1090 = vset.pattern.permute.xlu0 0
  %1091 = vperm.xlu0 %1090, %v1013
  %v1092 = vpop.permute.xlu0 %1091
  %1095 = vset.pattern.permute.xlu0 0
  %1096 = vperm.xlu0 %1095, %v1014
  %v1097 = vpop.permute.xlu0 %1096
  %1100 = vset.pattern.permute.xlu0 0
  %1101 = vperm.xlu0 %1100, %v1015
  %v1102 = vpop.permute.xlu0 %1101
  %1105 = vset.pattern.permute.xlu0 0
  %1106 = vperm.xlu0 %1105, %v1016
  %v1107 = vpop.permute.xlu0 %1106
  %1110 = vset.pattern.permute.xlu0 0
  %1111 = vperm.xlu0 %1110, %v1017
  %v1112 = vpop.permute.xlu0 %1111
  %1115 = vset.pattern.permute.xlu0 0
  %1116 = vperm.xlu0 %1115, %v1018
  %v1117 = vpop.permute.xlu0 %1116
  %1120 = vset.pattern.permute.xlu0 0
  %1121 = vperm.xlu0 %1120, %v1019
  %v1122 = vpop.permute.xlu0 %1121
  %1125 = vset.pattern.permute.xlu0 0
  %1126 = vperm.xlu0 %1125, %v1020
  %v1127 = vpop.permute.xlu0 %1126
  %1130 = vset.pattern.permute.xlu0 0
  %1131 = vperm.xlu0 %1130, %v1021
  %v1132 = vpop.permute.xlu0 %1131
  %1135 = vset.pattern.permute.xlu0 0
  %1136 = vperm.xlu0 %1135, %v1022
  %v1137 = vpop.permute.xlu0 %1136
  %1140 = vset.pattern.permute.xlu0 0
  %1141 = vperm.xlu0 %1140, %v1023
  %v1142 = vpop.permute.xlu0 %1141
  %1145 = vset.pattern.permute.xlu0 0
  %1146 = vperm.xlu0 %1145, %v1024
  %v1147 = vpop.permute.xlu0 %1146
  %1150 = vset.pattern.permute.xlu0 0
  %1151 = vperm.xlu0 %1150, %v1025
  %v1152 = vpop.permute.xlu0 %1151
  %1155 = vset.pattern.permute.xlu0 0
  %1156 = vperm.xlu0 %1155, %v1026
  %v1157 = vpop.permute.xlu0 %1156
  %1160 = vset.pattern.permute.xlu0 0
  %1161 = vperm.xlu0 %1160, %v1027
  %v1162 = vpop.permute.xlu0 %1161
  %1165 = vset.pattern.permute.xlu0 0
  %1166 = vperm.xlu0 %1165, %v1028
  %v1167 = vpop.permute.xlu0 %1166
  %1170 = vset.pattern.permute.xlu0 0
  %1171 = vperm.xlu0 %1170, %v1029
  %v1172 = vpop.permute.xlu0 %1171
  %v1174 = vmul.f32 %v598, %v1087
  %v1175 = vmul.f32 %v600, %v1087
  %v1176 = vmul.f32 %v604, %v1092
  %v1177 = vmul.f32 %v606, %v1092
  %v1178 = vmul.f32 %v610, %v1097
  %v1179 = vmul.f32 %v612, %v1097
  %v1180 = vmul.f32 %v616, %v1102
  %v1181 = vmul.f32 %v618, %v1102
  %v1182 = vmul.f32 %v622, %v1107
  %v1183 = vmul.f32 %v624, %v1107
  %v1184 = vmul.f32 %v628, %v1112
  %v1185 = vmul.f32 %v630, %v1112
  %v1186 = vmul.f32 %v634, %v1117
  %v1187 = vmul.f32 %v636, %v1117
  %v1188 = vmul.f32 %v640, %v1122
  %v1189 = vmul.f32 %v642, %v1122
  %v1190 = vmul.f32 %v646, %v1127
  %v1191 = vmul.f32 %v648, %v1127
  %v1192 = vmul.f32 %v652, %v1132
  %v1193 = vmul.f32 %v654, %v1132
  %v1194 = vmul.f32 %v658, %v1137
  %v1195 = vmul.f32 %v660, %v1137
  %v1196 = vmul.f32 %v664, %v1142
  %v1197 = vmul.f32 %v666, %v1142
  %v1198 = vmul.f32 %v670, %v1147
  %v1199 = vmul.f32 %v672, %v1147
  %v1200 = vmul.f32 %v676, %v1152
  %v1201 = vmul.f32 %v678, %v1152
  %v1202 = vmul.f32 %v682, %v1157
  %v1203 = vmul.f32 %v684, %v1157
  %v1204 = vmul.f32 %v688, %v1162
  %v1205 = vmul.f32 %v690, %v1162
  %v1206 = vmul.f32 %v694, %v1167
  %v1207 = vmul.f32 %v696, %v1167
  %v1208 = vmul.f32 %v700, %v1172
  %v1209 = vmul.f32 %v702, %v1172
  %1211 = vset.pattern.permute.xlu0 0
  %1212 = vperm.xlu0 %1211, %v1066
  %v1213 = vpop.permute.xlu0 %1212
  %1216 = vset.pattern.permute.xlu0 0
  %1217 = vperm.xlu0 %1216, %v1067
  %v1218 = vpop.permute.xlu0 %1217
  %1221 = vset.pattern.permute.xlu0 0
  %1222 = vperm.xlu0 %1221, %v1068
  %v1223 = vpop.permute.xlu0 %1222
  %1226 = vset.pattern.permute.xlu0 0
  %1227 = vperm.xlu0 %1226, %v1069
  %v1228 = vpop.permute.xlu0 %1227
  %1231 = vset.pattern.permute.xlu0 0
  %1232 = vperm.xlu0 %1231, %v1070
  %v1233 = vpop.permute.xlu0 %1232
  %1236 = vset.pattern.permute.xlu0 0
  %1237 = vperm.xlu0 %1236, %v1071
  %v1238 = vpop.permute.xlu0 %1237
  %1241 = vset.pattern.permute.xlu0 0
  %1242 = vperm.xlu0 %1241, %v1072
  %v1243 = vpop.permute.xlu0 %1242
  %1246 = vset.pattern.permute.xlu0 0
  %1247 = vperm.xlu0 %1246, %v1073
  %v1248 = vpop.permute.xlu0 %1247
  %1251 = vset.pattern.permute.xlu0 0
  %1252 = vperm.xlu0 %1251, %v1074
  %v1253 = vpop.permute.xlu0 %1252
  %1256 = vset.pattern.permute.xlu0 0
  %1257 = vperm.xlu0 %1256, %v1075
  %v1258 = vpop.permute.xlu0 %1257
  %1261 = vset.pattern.permute.xlu0 0
  %1262 = vperm.xlu0 %1261, %v1076
  %v1263 = vpop.permute.xlu0 %1262
  %1266 = vset.pattern.permute.xlu0 0
  %1267 = vperm.xlu0 %1266, %v1077
  %v1268 = vpop.permute.xlu0 %1267
  %1271 = vset.pattern.permute.xlu0 0
  %1272 = vperm.xlu0 %1271, %v1078
  %v1273 = vpop.permute.xlu0 %1272
  %1276 = vset.pattern.permute.xlu0 0
  %1277 = vperm.xlu0 %1276, %v1079
  %v1278 = vpop.permute.xlu0 %1277
  %1281 = vset.pattern.permute.xlu0 0
  %1282 = vperm.xlu0 %1281, %v1080
  %v1283 = vpop.permute.xlu0 %1282
  %1286 = vset.pattern.permute.xlu0 0
  %1287 = vperm.xlu0 %1286, %v1081
  %v1288 = vpop.permute.xlu0 %1287
  %1291 = vset.pattern.permute.xlu0 0
  %1292 = vperm.xlu0 %1291, %v1082
  %v1293 = vpop.permute.xlu0 %1292
  %1296 = vset.pattern.permute.xlu0 0
  %1297 = vperm.xlu0 %1296, %v1083
  %v1298 = vpop.permute.xlu0 %1297
  %v1300 = vadd.f32 %v1174, %v1213
  %v1301 = vadd.f32 %v1175, %v1213
  %v1302 = vadd.f32 %v1176, %v1218
  %v1303 = vadd.f32 %v1177, %v1218
  %v1304 = vadd.f32 %v1178, %v1223
  %v1305 = vadd.f32 %v1179, %v1223
  %v1306 = vadd.f32 %v1180, %v1228
  %v1307 = vadd.f32 %v1181, %v1228
  %v1308 = vadd.f32 %v1182, %v1233
  %v1309 = vadd.f32 %v1183, %v1233
  %v1310 = vadd.f32 %v1184, %v1238
  %v1311 = vadd.f32 %v1185, %v1238
  %v1312 = vadd.f32 %v1186, %v1243
  %v1313 = vadd.f32 %v1187, %v1243
  %v1314 = vadd.f32 %v1188, %v1248
  %v1315 = vadd.f32 %v1189, %v1248
  %v1316 = vadd.f32 %v1190, %v1253
  %v1317 = vadd.f32 %v1191, %v1253
  %v1318 = vadd.f32 %v1192, %v1258
  %v1319 = vadd.f32 %v1193, %v1258
  %v1320 = vadd.f32 %v1194, %v1263
  %v1321 = vadd.f32 %v1195, %v1263
  %v1322 = vadd.f32 %v1196, %v1268
  %v1323 = vadd.f32 %v1197, %v1268
  %v1324 = vadd.f32 %v1198, %v1273
  %v1325 = vadd.f32 %v1199, %v1273
  %v1326 = vadd.f32 %v1200, %v1278
  %v1327 = vadd.f32 %v1201, %v1278
  %v1328 = vadd.f32 %v1202, %v1283
  %v1329 = vadd.f32 %v1203, %v1283
  %v1330 = vadd.f32 %v1204, %v1288
  %v1331 = vadd.f32 %v1205, %v1288
  %v1332 = vadd.f32 %v1206, %v1293
  %v1333 = vadd.f32 %v1207, %v1293
  %v1334 = vadd.f32 %v1208, %v1298
  %v1335 = vadd.f32 %v1209, %v1298
  %v1336 = vld [vmem:[%s5] sm:$0xff]
  %v1337 = vld [vmem:[%s5 + $0x8] sm:$0xff]
  %v1338 = vld [vmem:[%s5 + $0x10] sm:$0xff]
  %v1339 = vld [vmem:[%s5 + $0x18] sm:$0xff]
  %v1340 = vld [vmem:[%s5 + $0x20] sm:$0xff]
  %v1341 = vld [vmem:[%s5 + $0x28] sm:$0xff]
  %v1342 = vld [vmem:[%s5 + $0x30] sm:$0xff]
  %v1343 = vld [vmem:[%s5 + $0x38] sm:$0xff]
  %v1344 = vld [vmem:[%s5 + $0x40] sm:$0xff]
  %v1345 = vld [vmem:[%s5 + $0x48] sm:$0xff]
  %v1346 = vld [vmem:[%s5 + $0x50] sm:$0xff]
  %v1347 = vld [vmem:[%s5 + $0x58] sm:$0xff]
  %v1348 = vld [vmem:[%s5 + $0x60] sm:$0xff]
  %v1349 = vld [vmem:[%s5 + $0x68] sm:$0xff]
  %v1350 = vld [vmem:[%s5 + $0x70] sm:$0xff]
  %v1351 = vld [vmem:[%s5 + $0x78] sm:$0xff]
  %v1352 = vld [vmem:[%s5 + $0x80] sm:$0xff]
  %v1353 = vld [vmem:[%s5 + $0x88] sm:$0xff]
  %v1354 = vld [vmem:[%s5 + $0x90] sm:$0xff]
  %v1355 = vld [vmem:[%s5 + $0x98] sm:$0xff]
  %v1356 = vld [vmem:[%s5 + $0xa0] sm:$0xff]
  %v1357 = vld [vmem:[%s5 + $0xa8] sm:$0xff]
  %v1358 = vld [vmem:[%s5 + $0xb0] sm:$0xff]
  %v1359 = vld [vmem:[%s5 + $0xb8] sm:$0xff]
  %v1360 = vld [vmem:[%s5 + $0xc0] sm:$0xff]
  %v1361 = vld [vmem:[%s5 + $0xc8] sm:$0xff]
  %v1362 = vld [vmem:[%s5 + $0xd0] sm:$0xff]
  %v1363 = vld [vmem:[%s5 + $0xd8] sm:$0xff]
  %v1364 = vld [vmem:[%s5 + $0xe0] sm:$0xff]
  %v1365 = vld [vmem:[%s5 + $0xe8] sm:$0xff]
  %v1366 = vld [vmem:[%s5 + $0xf0] sm:$0xff]
  %v1367 = vld [vmem:[%s5 + $0xf8] sm:$0xff]
  %v1368 = vld [vmem:[%s5 + $0x100] sm:$0xff]
  %v1369 = vld [vmem:[%s5 + $0x108] sm:$0xff]
  %v1370 = vld [vmem:[%s5 + $0x110] sm:$0xff]
  %v1371 = vld [vmem:[%s5 + $0x118] sm:$0xff]
  %v1372 = vld [vmem:[%s5 + $0x120] sm:$0xff]
  %v1373 = vld [vmem:[%s5 + $0x128] sm:$0xff]
  %v1374 = vld [vmem:[%s5 + $0x130] sm:$0xff]
  %v1375 = vld [vmem:[%s5 + $0x138] sm:$0xff]
  %v1376 = vld [vmem:[%s5 + $0x140] sm:$0xff]
  %v1377 = vld [vmem:[%s5 + $0x148] sm:$0xff]
  %v1378 = vld [vmem:[%s5 + $0x150] sm:$0xff]
  %v1379 = vld [vmem:[%s5 + $0x158] sm:$0xff]
  %v1380 = vld [vmem:[%s5 + $0x160] sm:$0xff]
  %v1381 = vld [vmem:[%s5 + $0x168] sm:$0xff]
  %v1382 = vld [vmem:[%s5 + $0x170] sm:$0xff]
  %v1383 = vld [vmem:[%s5 + $0x178] sm:$0xff]
  %v1384 = vld [vmem:[%s5 + $0x180] sm:$0xff]
  %v1385 = vld [vmem:[%s5 + $0x188] sm:$0xff]
  %v1386 = vld [vmem:[%s5 + $0x190] sm:$0xff]
  %v1387 = vld [vmem:[%s5 + $0x198] sm:$0xff]
  %v1388 = vld [vmem:[%s5 + $0x1a0] sm:$0xff]
  %v1389 = vld [vmem:[%s5 + $0x1a8] sm:$0xff]
  %v1390 = vld [vmem:[%s5 + $0x1b0] sm:$0xff]
  %v1391 = vld [vmem:[%s5 + $0x1b8] sm:$0xff]
  %v1392 = vld [vmem:[%s5 + $0x1c0] sm:$0xff]
  %v1393 = vld [vmem:[%s5 + $0x1c8] sm:$0xff]
  %v1394 = vld [vmem:[%s5 + $0x1d0] sm:$0xff]
  %v1395 = vld [vmem:[%s5 + $0x1d8] sm:$0xff]
  %v1396 = vld [vmem:[%s5 + $0x1e0] sm:$0xff]
  %v1397 = vld [vmem:[%s5 + $0x1e8] sm:$0xff]
  %v1398 = vld [vmem:[%s5 + $0x1f0] sm:$0xff]
  %v1399 = vld [vmem:[%s5 + $0x1f8] sm:$0xff]
  %v1400 = vld [vmem:[%s5 + $0x200] sm:$0xff]
  %v1401 = vld [vmem:[%s5 + $0x208] sm:$0xff]
  %v1402 = vld [vmem:[%s5 + $0x210] sm:$0xff]
  %v1403 = vld [vmem:[%s5 + $0x218] sm:$0xff]
  %v1404 = vld [vmem:[%s5 + $0x220] sm:$0xff]
  %v1405 = vld [vmem:[%s5 + $0x228] sm:$0xff]
  %v1406 = vld [vmem:[%s5 + $0x230] sm:$0xff]
  %v1407 = vld [vmem:[%s5 + $0x238] sm:$0xff]
  %v1408 = vld [vmem:[%s5 + $0x240] sm:$0xff]
  %v1409 = vld [vmem:[%s5 + $0x248] sm:$0xff]
  %v1410 = vld [vmem:[%s5 + $0x250] sm:$0xff]
  %v1411 = vld [vmem:[%s5 + $0x258] sm:$0xff]
  %v1412 = vld [vmem:[%s5 + $0x260] sm:$0xff]
  %v1413 = vld [vmem:[%s5 + $0x268] sm:$0xff]
  %v1414 = vld [vmem:[%s5 + $0x270] sm:$0xff]
  %v1415 = vld [vmem:[%s5 + $0x278] sm:$0xff]
  %v1416 = vld [vmem:[%s5 + $0x280] sm:$0xff]
  %v1417 = vld [vmem:[%s5 + $0x288] sm:$0xff]
  %v1418 = vld [vmem:[%s5 + $0x290] sm:$0xff]
  %v1419 = vld [vmem:[%s5 + $0x298] sm:$0xff]
  %v1420 = vld [vmem:[%s5 + $0x2a0] sm:$0xff]
  %v1421 = vld [vmem:[%s5 + $0x2a8] sm:$0xff]
  %v1422 = vld [vmem:[%s5 + $0x2b0] sm:$0xff]
  %v1423 = vld [vmem:[%s5 + $0x2b8] sm:$0xff]
  %v1424 = vld [vmem:[%s5 + $0x2c0] sm:$0xff]
  %v1425 = vld [vmem:[%s5 + $0x2c8] sm:$0xff]
  %v1426 = vld [vmem:[%s5 + $0x2d0] sm:$0xff]
  %v1427 = vld [vmem:[%s5 + $0x2d8] sm:$0xff]
  %v1428 = vld [vmem:[%s5 + $0x2e0] sm:$0xff]
  %v1429 = vld [vmem:[%s5 + $0x2e8] sm:$0xff]
  %v1430 = vld [vmem:[%s5 + $0x2f0] sm:$0xff]
  %v1431 = vld [vmem:[%s5 + $0x2f8] sm:$0xff]
  %v1432 = vld [vmem:[%s5 + $0x300] sm:$0xff]
  %v1433 = vld [vmem:[%s5 + $0x308] sm:$0xff]
  %v1434 = vld [vmem:[%s5 + $0x310] sm:$0xff]
  %v1435 = vld [vmem:[%s5 + $0x318] sm:$0xff]
  %v1436 = vld [vmem:[%s5 + $0x320] sm:$0xff]
  %v1437 = vld [vmem:[%s5 + $0x328] sm:$0xff]
  %v1438 = vld [vmem:[%s5 + $0x330] sm:$0xff]
  %v1439 = vld [vmem:[%s5 + $0x338] sm:$0xff]
  %v1440 = vld [vmem:[%s5 + $0x340] sm:$0xff]
  %v1441 = vld [vmem:[%s5 + $0x348] sm:$0xff]
  %v1442 = vld [vmem:[%s5 + $0x350] sm:$0xff]
  %v1443 = vld [vmem:[%s5 + $0x358] sm:$0xff]
  %v1444 = vld [vmem:[%s5 + $0x360] sm:$0xff]
  %v1445 = vld [vmem:[%s5 + $0x368] sm:$0xff]
  %v1446 = vld [vmem:[%s5 + $0x370] sm:$0xff]
  %v1447 = vld [vmem:[%s5 + $0x378] sm:$0xff]
  %v1448 = vld [vmem:[%s5 + $0x380] sm:$0xff]
  %v1449 = vld [vmem:[%s5 + $0x388] sm:$0xff]
  %v1450 = vld [vmem:[%s5 + $0x390] sm:$0xff]
  %v1451 = vld [vmem:[%s5 + $0x398] sm:$0xff]
  %v1452 = vld [vmem:[%s5 + $0x3a0] sm:$0xff]
  %v1453 = vld [vmem:[%s5 + $0x3a8] sm:$0xff]
  %v1454 = vld [vmem:[%s5 + $0x3b0] sm:$0xff]
  %v1455 = vld [vmem:[%s5 + $0x3b8] sm:$0xff]
  %v1456 = vld [vmem:[%s5 + $0x3c0] sm:$0xff]
  %v1457 = vld [vmem:[%s5 + $0x3c8] sm:$0xff]
  %v1458 = vld [vmem:[%s5 + $0x3d0] sm:$0xff]
  %v1459 = vld [vmem:[%s5 + $0x3d8] sm:$0xff]
  %v1460 = vld [vmem:[%s5 + $0x3e0] sm:$0xff]
  %v1461 = vld [vmem:[%s5 + $0x3e8] sm:$0xff]
  %v1462 = vld [vmem:[%s5 + $0x3f0] sm:$0xff]
  %v1463 = vld [vmem:[%s5 + $0x3f8] sm:$0xff]
  %v1464 = vld [vmem:[%s5 + $0x400] sm:$0xff]
  %v1465 = vld [vmem:[%s5 + $0x408] sm:$0xff]
  %v1466 = vld [vmem:[%s5 + $0x410] sm:$0xff]
  %v1467 = vld [vmem:[%s5 + $0x418] sm:$0xff]
  %v1468 = vld [vmem:[%s5 + $0x420] sm:$0xff]
  %v1469 = vld [vmem:[%s5 + $0x428] sm:$0xff]
  %v1470 = vld [vmem:[%s5 + $0x430] sm:$0xff]
  %v1471 = vld [vmem:[%s5 + $0x438] sm:$0xff]
  %v1472 = vld [vmem:[%s5 + $0x440] sm:$0xff]
  %v1473 = vld [vmem:[%s5 + $0x448] sm:$0xff]
  %v1474 = vld [vmem:[%s5 + $0x450] sm:$0xff]
  %v1475 = vld [vmem:[%s5 + $0x458] sm:$0xff]
  %v1476 = vld [vmem:[%s5 + $0x460] sm:$0xff]
  %v1477 = vld [vmem:[%s5 + $0x468] sm:$0xff]
  %v1478 = vld [vmem:[%s5 + $0x470] sm:$0xff]
  %v1479 = vld [vmem:[%s5 + $0x478] sm:$0xff]
  %v1480 = vld [vmem:[%s5 + $0x480] sm:$0xff]
  %v1481 = vld [vmem:[%s5 + $0x488] sm:$0xff]
  %v1482 = vld [vmem:[%s5 + $0x490] sm:$0xff]
  %v1483 = vld [vmem:[%s5 + $0x498] sm:$0xff]
  %v1484 = vld [vmem:[%s5 + $0x4a0] sm:$0xff]
  %v1485 = vld [vmem:[%s5 + $0x4a8] sm:$0xff]
  %v1486 = vld [vmem:[%s5 + $0x4b0] sm:$0xff]
  %v1487 = vld [vmem:[%s5 + $0x4b8] sm:$0xff]
  %v1488 = vld [vmem:[%s5 + $0x4c0] sm:$0xff]
  %v1489 = vld [vmem:[%s5 + $0x4c8] sm:$0xff]
  %v1490 = vld [vmem:[%s5 + $0x4d0] sm:$0xff]
  %v1491 = vld [vmem:[%s5 + $0x4d8] sm:$0xff]
  %v1492 = vld [vmem:[%s5 + $0x4e0] sm:$0xff]
  %v1493 = vld [vmem:[%s5 + $0x4e8] sm:$0xff]
  %v1494 = vld [vmem:[%s5 + $0x4f0] sm:$0xff]
  %v1495 = vld [vmem:[%s5 + $0x4f8] sm:$0xff]
  %v1496 = vld [vmem:[%s5 + $0x500] sm:$0xff]
  %v1497 = vld [vmem:[%s5 + $0x508] sm:$0xff]
  %v1498 = vld [vmem:[%s5 + $0x510] sm:$0xff]
  %v1499 = vld [vmem:[%s5 + $0x518] sm:$0xff]
  %v1500 = vld [vmem:[%s5 + $0x520] sm:$0xff]
  %v1501 = vld [vmem:[%s5 + $0x528] sm:$0xff]
  %v1502 = vld [vmem:[%s5 + $0x530] sm:$0xff]
  %v1503 = vld [vmem:[%s5 + $0x538] sm:$0xff]
  %v1504 = vld [vmem:[%s5 + $0x540] sm:$0xff]
  %v1505 = vld [vmem:[%s5 + $0x548] sm:$0xff]
  %v1506 = vld [vmem:[%s5 + $0x550] sm:$0xff]
  %v1507 = vld [vmem:[%s5 + $0x558] sm:$0xff]
  %v1508 = vld [vmem:[%s5 + $0x560] sm:$0xff]
  %v1509 = vld [vmem:[%s5 + $0x568] sm:$0xff]
  %v1510 = vld [vmem:[%s5 + $0x570] sm:$0xff]
  %v1511 = vld [vmem:[%s5 + $0x578] sm:$0xff]
  %v1512 = vld [vmem:[%s5 + $0x580] sm:$0xff]
  %v1513 = vld [vmem:[%s5 + $0x588] sm:$0xff]
  %v1514 = vld [vmem:[%s5 + $0x590] sm:$0xff]
  %v1515 = vld [vmem:[%s5 + $0x598] sm:$0xff]
  %v1516 = vld [vmem:[%s5 + $0x5a0] sm:$0xff]
  %v1517 = vld [vmem:[%s5 + $0x5a8] sm:$0xff]
  %v1518 = vld [vmem:[%s5 + $0x5b0] sm:$0xff]
  %v1519 = vld [vmem:[%s5 + $0x5b8] sm:$0xff]
  %v1520 = vld [vmem:[%s5 + $0x5c0] sm:$0xff]
  %v1521 = vld [vmem:[%s5 + $0x5c8] sm:$0xff]
  %v1522 = vld [vmem:[%s5 + $0x5d0] sm:$0xff]
  %v1523 = vld [vmem:[%s5 + $0x5d8] sm:$0xff]
  %v1524 = vld [vmem:[%s5 + $0x5e0] sm:$0xff]
  %v1525 = vld [vmem:[%s5 + $0x5e8] sm:$0xff]
  %v1526 = vld [vmem:[%s5 + $0x5f0] sm:$0xff]
  %v1527 = vld [vmem:[%s5 + $0x5f8] sm:$0xff]
  %v1528 = vld [vmem:[%s5 + $0x600] sm:$0xff]
  %v1529 = vld [vmem:[%s5 + $0x608] sm:$0xff]
  %v1530 = vld [vmem:[%s5 + $0x610] sm:$0xff]
  %v1531 = vld [vmem:[%s5 + $0x618] sm:$0xff]
  %v1532 = vld [vmem:[%s5 + $0x620] sm:$0xff]
  %v1533 = vld [vmem:[%s5 + $0x628] sm:$0xff]
  %v1534 = vld [vmem:[%s5 + $0x630] sm:$0xff]
  %v1535 = vld [vmem:[%s5 + $0x638] sm:$0xff]
  %v1536 = vld [vmem:[%s5 + $0x640] sm:$0xff]
  %v1537 = vld [vmem:[%s5 + $0x648] sm:$0xff]
  %v1538 = vld [vmem:[%s5 + $0x650] sm:$0xff]
  %v1539 = vld [vmem:[%s5 + $0x658] sm:$0xff]
  %v1540 = vld [vmem:[%s5 + $0x660] sm:$0xff]
  %v1541 = vld [vmem:[%s5 + $0x668] sm:$0xff]
  %v1542 = vld [vmem:[%s5 + $0x670] sm:$0xff]
  %v1543 = vld [vmem:[%s5 + $0x678] sm:$0xff]
  %v1544 = vld [vmem:[%s5 + $0x680] sm:$0xff]
  %v1545 = vld [vmem:[%s5 + $0x688] sm:$0xff]
  %v1546 = vld [vmem:[%s5 + $0x690] sm:$0xff]
  %v1547 = vld [vmem:[%s5 + $0x698] sm:$0xff]
  %v1548 = vld [vmem:[%s5 + $0x6a0] sm:$0xff]
  %v1549 = vld [vmem:[%s5 + $0x6a8] sm:$0xff]
  %v1550 = vld [vmem:[%s5 + $0x6b0] sm:$0xff]
  %v1551 = vld [vmem:[%s5 + $0x6b8] sm:$0xff]
  %vm1552 = vcmask 130048
  %v1554 = vsel %vm1552, %v1337, 0
  %v1557 = vsel %vm1552, %v1339, 0
  %v1560 = vsel %vm1552, %v1341, 0
  %v1563 = vsel %vm1552, %v1343, 0
  %v1566 = vsel %vm1552, %v1345, 0
  %v1569 = vsel %vm1552, %v1347, 0
  %v1572 = vsel %vm1552, %v1349, 0
  %v1575 = vsel %vm1552, %v1351, 0
  %v1578 = vsel %vm1552, %v1353, 0
  %v1581 = vsel %vm1552, %v1355, 0
  %v1584 = vsel %vm1552, %v1357, 0
  %v1587 = vsel %vm1552, %v1359, 0
  %v1590 = vsel %vm1552, %v1361, 0
  %v1593 = vsel %vm1552, %v1363, 0
  %v1596 = vsel %vm1552, %v1365, 0
  %v1599 = vsel %vm1552, %v1367, 0
  %v1602 = vsel %vm1552, %v1369, 0
  %v1605 = vsel %vm1552, %v1371, 0
  %v1608 = vsel %vm1552, %v1373, 0
  %v1611 = vsel %vm1552, %v1375, 0
  %v1614 = vsel %vm1552, %v1377, 0
  %v1617 = vsel %vm1552, %v1379, 0
  %v1620 = vsel %vm1552, %v1381, 0
  %v1623 = vsel %vm1552, %v1383, 0
  %v1626 = vsel %vm1552, %v1385, 0
  %v1629 = vsel %vm1552, %v1387, 0
  %v1632 = vsel %vm1552, %v1389, 0
  %v1635 = vsel %vm1552, %v1391, 0
  %v1638 = vsel %vm1552, %v1393, 0
  %v1641 = vsel %vm1552, %v1395, 0
  %v1644 = vsel %vm1552, %v1397, 0
  %v1647 = vsel %vm1552, %v1399, 0
  %v1650 = vsel %vm1552, %v1401, 0
  %v1653 = vsel %vm1552, %v1403, 0
  %v1656 = vsel %vm1552, %v1405, 0
  %v1659 = vsel %vm1552, %v1407, 0
  %v1662 = vsel %vm1552, %v1409, 0
  %v1665 = vsel %vm1552, %v1411, 0
  %v1668 = vsel %vm1552, %v1413, 0
  %v1671 = vsel %vm1552, %v1415, 0
  %v1674 = vsel %vm1552, %v1417, 0
  %v1677 = vsel %vm1552, %v1419, 0
  %v1680 = vsel %vm1552, %v1421, 0
  %v1683 = vsel %vm1552, %v1423, 0
  %v1686 = vsel %vm1552, %v1425, 0
  %v1689 = vsel %vm1552, %v1427, 0
  %v1692 = vsel %vm1552, %v1429, 0
  %v1695 = vsel %vm1552, %v1431, 0
  %v1698 = vsel %vm1552, %v1433, 0
  %v1701 = vsel %vm1552, %v1435, 0
  %v1704 = vsel %vm1552, %v1437, 0
  %v1707 = vsel %vm1552, %v1439, 0
  %v1710 = vsel %vm1552, %v1441, 0
  %v1713 = vsel %vm1552, %v1443, 0
  %v1716 = vsel %vm1552, %v1445, 0
  %v1719 = vsel %vm1552, %v1447, 0
  %v1722 = vsel %vm1552, %v1449, 0
  %v1725 = vsel %vm1552, %v1451, 0
  %v1728 = vsel %vm1552, %v1453, 0
  %v1731 = vsel %vm1552, %v1455, 0
  %v1734 = vsel %vm1552, %v1457, 0
  %v1737 = vsel %vm1552, %v1459, 0
  %v1740 = vsel %vm1552, %v1461, 0
  %v1743 = vsel %vm1552, %v1463, 0
  %v1746 = vsel %vm1552, %v1465, 0
  %v1749 = vsel %vm1552, %v1467, 0
  %v1752 = vsel %vm1552, %v1469, 0
  %v1755 = vsel %vm1552, %v1471, 0
  %v1758 = vsel %vm1552, %v1473, 0
  %v1761 = vsel %vm1552, %v1475, 0
  %v1764 = vsel %vm1552, %v1477, 0
  %v1767 = vsel %vm1552, %v1479, 0
  %v1770 = vsel %vm1552, %v1481, 0
  %v1773 = vsel %vm1552, %v1483, 0
  %v1776 = vsel %vm1552, %v1485, 0
  %v1779 = vsel %vm1552, %v1487, 0
  %v1782 = vsel %vm1552, %v1489, 0
  %v1785 = vsel %vm1552, %v1491, 0
  %v1788 = vsel %vm1552, %v1493, 0
  %v1791 = vsel %vm1552, %v1495, 0
  %v1794 = vsel %vm1552, %v1497, 0
  %v1797 = vsel %vm1552, %v1499, 0
  %v1800 = vsel %vm1552, %v1501, 0
  %v1803 = vsel %vm1552, %v1503, 0
  %v1806 = vsel %vm1552, %v1505, 0
  %v1809 = vsel %vm1552, %v1507, 0
  %v1812 = vsel %vm1552, %v1509, 0
  %v1815 = vsel %vm1552, %v1511, 0
  %v1818 = vsel %vm1552, %v1513, 0
  %v1821 = vsel %vm1552, %v1515, 0
  %v1824 = vsel %vm1552, %v1517, 0
  %v1827 = vsel %vm1552, %v1519, 0
  %v1830 = vsel %vm1552, %v1521, 0
  %v1833 = vsel %vm1552, %v1523, 0
  %v1836 = vsel %vm1552, %v1525, 0
  %v1839 = vsel %vm1552, %v1527, 0
  %v1842 = vsel %vm1552, %v1529, 0
  %v1845 = vsel %vm1552, %v1531, 0
  %v1848 = vsel %vm1552, %v1533, 0
  %v1851 = vsel %vm1552, %v1535, 0
  %v1854 = vsel %vm1552, %v1537, 0
  %v1857 = vsel %vm1552, %v1539, 0
  %v1860 = vsel %vm1552, %v1541, 0
  %v1863 = vsel %vm1552, %v1543, 0
  %v1866 = vsel %vm1552, %v1545, 0
  %v1869 = vsel %vm1552, %v1547, 0
  %v1872 = vsel %vm1552, %v1549, 0
  %v1875 = vsel %vm1552, %v1551, 0
  %1877 = vmatprep.subr.mxu0 %v1331
  %1878 = vmatpush1.msra.mxu0 %v1330
  %1879 = vmatprep.subr.mxu0 %v1329
  %1880 = vmatpush1.msra.mxu0 %v1328
  %1881 = vmatprep.subr.mxu0 %v1327
  %1882 = vmatpush1.msra.mxu0 %v1326
  %1883 = vmatprep.subr.mxu0 %v1325
  %1884 = vmatpush1.msra.mxu0 %v1324
  %1885 = vmatprep.subr.mxu0 %v1323
  %1886 = vmatpush1.msra.mxu0 %v1322
  %1887 = vmatprep.subr.mxu0 %v1321
  %1888 = vmatpush1.msra.mxu0 %v1320
  %1889 = vmatprep.subr.mxu0 %v1319
  %1890 = vmatpush1.msra.mxu0 %v1318
  %1891 = vmatprep.subr.mxu0 %v1317
  %1892 = vmatpush1.msra.mxu0 %v1316
  %1893 = vmatprep.subr.mxu0 %v1315
  %1894 = vmatpush1.msra.mxu0 %v1314
  %1895 = vmatprep.subr.mxu0 %v1313
  %1896 = vmatpush1.msra.mxu0 %v1312
  %1897 = vmatprep.subr.mxu0 %v1311
  %1898 = vmatpush1.msra.mxu0 %v1310
  %1899 = vmatprep.subr.mxu0 %v1309
  %1900 = vmatpush1.msra.mxu0 %v1308
  %1901 = vmatprep.subr.mxu0 %v1307
  %1902 = vmatpush1.msra.mxu0 %v1306
  %1903 = vmatprep.subr.mxu0 %v1305
  %1904 = vmatpush1.msra.mxu0 %v1304
  %1905 = vmatprep.subr.mxu0 %v1303
  %1906 = vmatpush1.msra.mxu0 %v1302
  %1907 = vmatprep.subr.mxu0 %v1301
  %1908 = vmatpush1.msra.mxu0 %v1300
  %1909 = vmatprep.subr.mxu0 0.0
  %1910 = vmatpush2.msra.mxu0 0.0
  %1911 = vmatprep.subr.mxu0 0.0
  %1912 = vmatpush2.msra.mxu0 0.0
  %1913 = vmatprep.subr.mxu0 0.0
  %1914 = vmatpush2.msra.mxu0 0.0
  %1915 = vmatprep.subr.mxu0 0.0
  %1916 = vmatpush2.msra.mxu0 0.0
  %1917 = vmatprep.subr.mxu0 0.0
  %1918 = vmatpush2.msra.mxu0 0.0
  %1919 = vmatprep.subr.mxu0 0.0
  %1920 = vmatpush2.msra.mxu0 0.0
  %1921 = vmatprep.subr.mxu0 0.0
  %1922 = vmatpush2.msra.mxu0 0.0
  %1923 = vmatprep.subr.mxu0 0.0
  %1924 = vmatpush2.msra.mxu0 0.0
  %1925 = vmatprep.subr.mxu0 0.0
  %1926 = vmatpush2.msra.mxu0 0.0
  %1927 = vmatprep.subr.mxu0 0.0
  %1928 = vmatpush2.msra.mxu0 0.0
  %1929 = vmatprep.subr.mxu0 0.0
  %1930 = vmatpush2.msra.mxu0 0.0
  %1931 = vmatprep.subr.mxu0 0.0
  %1932 = vmatpush2.msra.mxu0 0.0
  %1933 = vmatprep.subr.mxu0 0.0
  %1934 = vmatpush2.msra.mxu0 0.0
  %1935 = vmatprep.subr.mxu0 0.0
  %1936 = vmatpush2.msra.mxu0 0.0
  %1937 = vmatprep.subr.mxu0 %v1335
  %1938 = vmatpush2.msra.mxu0 %v1334
  %1939 = vmatprep.subr.mxu0 %v1333
  %1940 = vmatpush2.msra.mxu0 %v1332
  %1941 = vmatprep.mubr.f32.mxu0 %v1554
  %1942 = vmatmul.mubr.f32.gmra.mxu0 %v1336
  %v1943 = vpop.f32.mrf.mxu0
  %v1944 = vadd.f32 0.0, %v1943
  %v1945 = vpop.f32.mrf.mxu0
  %v1946 = vadd.f32 0.0, %v1945
  %1947 = vmatprep.mubr.f32.mxu0 %v1557
  %1948 = vmatmul.mubr.f32.gmra.mxu0 %v1338
  %v1949 = vpop.f32.mrf.mxu0
  %v1950 = vadd.f32 0.0, %v1949
  %v1951 = vpop.f32.mrf.mxu0
  %v1952 = vadd.f32 0.0, %v1951
  %1953 = vmatprep.mubr.f32.mxu0 %v1560
  %1954 = vmatmul.mubr.f32.gmra.mxu0 %v1340
  %v1955 = vpop.f32.mrf.mxu0
  %v1956 = vadd.f32 0.0, %v1955
  %v1957 = vpop.f32.mrf.mxu0
  %v1958 = vadd.f32 0.0, %v1957
  %1959 = vmatprep.mubr.f32.mxu0 %v1563
  %1960 = vmatmul.mubr.f32.gmra.mxu0 %v1342
  %v1961 = vpop.f32.mrf.mxu0
  %v1962 = vadd.f32 0.0, %v1961
  %v1963 = vpop.f32.mrf.mxu0
  %v1964 = vadd.f32 0.0, %v1963
  %1965 = vmatprep.mubr.f32.mxu0 %v1566
  %1966 = vmatmul.mubr.f32.gmra.mxu0 %v1344
  %v1967 = vpop.f32.mrf.mxu0
  %v1968 = vadd.f32 0.0, %v1967
  %v1969 = vpop.f32.mrf.mxu0
  %v1970 = vadd.f32 0.0, %v1969
  %1971 = vmatprep.mubr.f32.mxu0 %v1569
  %1972 = vmatmul.mubr.f32.gmra.mxu0 %v1346
  %v1973 = vpop.f32.mrf.mxu0
  %v1974 = vadd.f32 0.0, %v1973
  %v1975 = vpop.f32.mrf.mxu0
  %v1976 = vadd.f32 0.0, %v1975
  %1977 = vmatprep.mubr.f32.mxu0 %v1572
  %1978 = vmatmul.mubr.f32.gmra.mxu0 %v1348
  %v1979 = vpop.f32.mrf.mxu0
  %v1980 = vadd.f32 0.0, %v1979
  %v1981 = vpop.f32.mrf.mxu0
  %v1982 = vadd.f32 0.0, %v1981
  %1983 = vmatprep.mubr.f32.mxu0 %v1575
  %1984 = vmatmul.mubr.f32.gmra.mxu0 %v1350
  %v1985 = vpop.f32.mrf.mxu0
  %v1986 = vadd.f32 0.0, %v1985
  %v1987 = vpop.f32.mrf.mxu0
  %v1988 = vadd.f32 0.0, %v1987
  %1989 = vmatprep.mubr.f32.mxu0 %v1578
  %1990 = vmatmul.mubr.f32.gmra.mxu0 %v1352
  %v1991 = vpop.f32.mrf.mxu0
  %v1992 = vadd.f32 0.0, %v1991
  %v1993 = vpop.f32.mrf.mxu0
  %v1994 = vadd.f32 0.0, %v1993
  %1995 = vmatprep.mubr.f32.mxu0 %v1581
  %1996 = vmatmul.mubr.f32.gmra.mxu0 %v1354
  %v1997 = vpop.f32.mrf.mxu0
  %v1998 = vadd.f32 0.0, %v1997
  %v1999 = vpop.f32.mrf.mxu0
  %v2000 = vadd.f32 0.0, %v1999
  %2001 = vmatprep.mubr.f32.mxu0 %v1584
  %2002 = vmatmul.mubr.f32.gmra.mxu0 %v1356
  %v2003 = vpop.f32.mrf.mxu0
  %v2004 = vadd.f32 0.0, %v2003
  %v2005 = vpop.f32.mrf.mxu0
  %v2006 = vadd.f32 0.0, %v2005
  %2007 = vmatprep.mubr.f32.mxu0 %v1587
  %2008 = vmatmul.mubr.f32.gmra.mxu0 %v1358
  %v2009 = vpop.f32.mrf.mxu0
  %v2010 = vadd.f32 0.0, %v2009
  %v2011 = vpop.f32.mrf.mxu0
  %v2012 = vadd.f32 0.0, %v2011
  %2013 = vmatprep.mubr.f32.mxu0 %v1590
  %2014 = vmatmul.mubr.f32.gmra.mxu0 %v1360
  %v2015 = vpop.f32.mrf.mxu0
  %v2016 = vadd.f32 0.0, %v2015
  %v2017 = vpop.f32.mrf.mxu0
  %v2018 = vadd.f32 0.0, %v2017
  %2019 = vmatprep.mubr.f32.mxu0 %v1593
  %2020 = vmatmul.mubr.f32.gmra.mxu0 %v1362
  %v2021 = vpop.f32.mrf.mxu0
  %v2022 = vadd.f32 0.0, %v2021
  %v2023 = vpop.f32.mrf.mxu0
  %v2024 = vadd.f32 0.0, %v2023
  %2025 = vmatprep.mubr.f32.mxu0 %v1596
  %2026 = vmatmul.mubr.f32.gmra.mxu0 %v1364
  %v2027 = vpop.f32.mrf.mxu0
  %v2028 = vadd.f32 0.0, %v2027
  %v2029 = vpop.f32.mrf.mxu0
  %v2030 = vadd.f32 0.0, %v2029
  %2031 = vmatprep.mubr.f32.mxu0 %v1599
  %2032 = vmatmul.mubr.f32.gmra.mxu0 %v1366
  %v2033 = vpop.f32.mrf.mxu0
  %v2034 = vadd.f32 0.0, %v2033
  %v2035 = vpop.f32.mrf.mxu0
  %v2036 = vadd.f32 0.0, %v2035
  %2037 = vmatprep.mubr.f32.mxu0 %v1602
  %2038 = vmatmul.mubr.f32.gmra.mxu0 %v1368
  %v2039 = vpop.f32.mrf.mxu0
  %v2040 = vadd.f32 0.0, %v2039
  %v2041 = vpop.f32.mrf.mxu0
  %v2042 = vadd.f32 0.0, %v2041
  %2043 = vmatprep.mubr.f32.mxu0 %v1605
  %2044 = vmatmul.mubr.f32.gmra.mxu0 %v1370
  %v2045 = vpop.f32.mrf.mxu0
  %v2046 = vadd.f32 0.0, %v2045
  %v2047 = vpop.f32.mrf.mxu0
  %v2048 = vadd.f32 0.0, %v2047
  %2049 = vmatprep.mubr.f32.mxu0 %v1608
  %2050 = vmatmul.mubr.f32.gmra.mxu0 %v1372
  %v2051 = vpop.f32.mrf.mxu0
  %v2052 = vadd.f32 0.0, %v2051
  %v2053 = vpop.f32.mrf.mxu0
  %v2054 = vadd.f32 0.0, %v2053
  %2055 = vmatprep.mubr.f32.mxu0 %v1611
  %2056 = vmatmul.mubr.f32.gmra.mxu0 %v1374
  %v2057 = vpop.f32.mrf.mxu0
  %v2058 = vadd.f32 0.0, %v2057
  %v2059 = vpop.f32.mrf.mxu0
  %v2060 = vadd.f32 0.0, %v2059
  %2061 = vmatprep.mubr.f32.mxu0 %v1614
  %2062 = vmatmul.mubr.f32.gmra.mxu0 %v1376
  %v2063 = vpop.f32.mrf.mxu0
  %v2064 = vadd.f32 0.0, %v2063
  %v2065 = vpop.f32.mrf.mxu0
  %v2066 = vadd.f32 0.0, %v2065
  %2067 = vmatprep.mubr.f32.mxu0 %v1617
  %2068 = vmatmul.mubr.f32.gmra.mxu0 %v1378
  %v2069 = vpop.f32.mrf.mxu0
  %v2070 = vadd.f32 0.0, %v2069
  %v2071 = vpop.f32.mrf.mxu0
  %v2072 = vadd.f32 0.0, %v2071
  %2073 = vmatprep.mubr.f32.mxu0 %v1620
  %2074 = vmatmul.mubr.f32.gmra.mxu0 %v1380
  %v2075 = vpop.f32.mrf.mxu0
  %v2076 = vadd.f32 0.0, %v2075
  %v2077 = vpop.f32.mrf.mxu0
  %v2078 = vadd.f32 0.0, %v2077
  %2079 = vmatprep.mubr.f32.mxu0 %v1623
  %2080 = vmatmul.mubr.f32.gmra.mxu0 %v1382
  %v2081 = vpop.f32.mrf.mxu0
  %v2082 = vadd.f32 0.0, %v2081
  %v2083 = vpop.f32.mrf.mxu0
  %v2084 = vadd.f32 0.0, %v2083
  %2085 = vmatprep.mubr.f32.mxu0 %v1626
  %2086 = vmatmul.mubr.f32.gmra.mxu0 %v1384
  %v2087 = vpop.f32.mrf.mxu0
  %v2088 = vadd.f32 0.0, %v2087
  %v2089 = vpop.f32.mrf.mxu0
  %v2090 = vadd.f32 0.0, %v2089
  %2091 = vmatprep.mubr.f32.mxu0 %v1629
  %2092 = vmatmul.mubr.f32.gmra.mxu0 %v1386
  %v2093 = vpop.f32.mrf.mxu0
  %v2094 = vadd.f32 0.0, %v2093
  %v2095 = vpop.f32.mrf.mxu0
  %v2096 = vadd.f32 0.0, %v2095
  %2097 = vmatprep.mubr.f32.mxu0 %v1632
  %2098 = vmatmul.mubr.f32.gmra.mxu0 %v1388
  %v2099 = vpop.f32.mrf.mxu0
  %v2100 = vadd.f32 0.0, %v2099
  %v2101 = vpop.f32.mrf.mxu0
  %v2102 = vadd.f32 0.0, %v2101
  %2103 = vmatprep.mubr.f32.mxu0 %v1635
  %2104 = vmatmul.mubr.f32.gmra.mxu0 %v1390
  %v2105 = vpop.f32.mrf.mxu0
  %v2106 = vadd.f32 0.0, %v2105
  %v2107 = vpop.f32.mrf.mxu0
  %v2108 = vadd.f32 0.0, %v2107
  %2109 = vmatprep.mubr.f32.mxu0 %v1638
  %2110 = vmatmul.mubr.f32.gmra.mxu0 %v1392
  %v2111 = vpop.f32.mrf.mxu0
  %v2112 = vadd.f32 0.0, %v2111
  %v2113 = vpop.f32.mrf.mxu0
  %v2114 = vadd.f32 0.0, %v2113
  %2115 = vmatprep.mubr.f32.mxu0 %v1641
  %2116 = vmatmul.mubr.f32.gmra.mxu0 %v1394
  %v2117 = vpop.f32.mrf.mxu0
  %v2118 = vadd.f32 0.0, %v2117
  %v2119 = vpop.f32.mrf.mxu0
  %v2120 = vadd.f32 0.0, %v2119
  %2121 = vmatprep.mubr.f32.mxu0 %v1644
  %2122 = vmatmul.mubr.f32.gmra.mxu0 %v1396
  %v2123 = vpop.f32.mrf.mxu0
  %v2124 = vadd.f32 0.0, %v2123
  %v2125 = vpop.f32.mrf.mxu0
  %v2126 = vadd.f32 0.0, %v2125
  %2127 = vmatprep.mubr.f32.mxu0 %v1647
  %2128 = vmatmul.mubr.f32.gmra.mxu0 %v1398
  %v2129 = vpop.f32.mrf.mxu0
  %v2130 = vadd.f32 0.0, %v2129
  %v2131 = vpop.f32.mrf.mxu0
  %v2132 = vadd.f32 0.0, %v2131
  %2133 = vmatprep.mubr.f32.mxu0 %v1650
  %2134 = vmatmul.mubr.f32.gmra.mxu0 %v1400
  %v2135 = vpop.f32.mrf.mxu0
  %v2136 = vadd.f32 0.0, %v2135
  %v2137 = vpop.f32.mrf.mxu0
  %v2138 = vadd.f32 0.0, %v2137
  %2139 = vmatprep.mubr.f32.mxu0 %v1653
  %2140 = vmatmul.mubr.f32.gmra.mxu0 %v1402
  %v2141 = vpop.f32.mrf.mxu0
  %v2142 = vadd.f32 0.0, %v2141
  %v2143 = vpop.f32.mrf.mxu0
  %v2144 = vadd.f32 0.0, %v2143
  %2145 = vmatprep.mubr.f32.mxu0 %v1656
  %2146 = vmatmul.mubr.f32.gmra.mxu0 %v1404
  %v2147 = vpop.f32.mrf.mxu0
  %v2148 = vadd.f32 0.0, %v2147
  %v2149 = vpop.f32.mrf.mxu0
  %v2150 = vadd.f32 0.0, %v2149
  %2151 = vmatprep.mubr.f32.mxu0 %v1659
  %2152 = vmatmul.mubr.f32.gmra.mxu0 %v1406
  %v2153 = vpop.f32.mrf.mxu0
  %v2154 = vadd.f32 0.0, %v2153
  %v2155 = vpop.f32.mrf.mxu0
  %v2156 = vadd.f32 0.0, %v2155
  %2157 = vmatprep.mubr.f32.mxu0 %v1662
  %2158 = vmatmul.mubr.f32.gmra.mxu0 %v1408
  %v2159 = vpop.f32.mrf.mxu0
  %v2160 = vadd.f32 0.0, %v2159
  %v2161 = vpop.f32.mrf.mxu0
  %v2162 = vadd.f32 0.0, %v2161
  %2163 = vmatprep.mubr.f32.mxu0 %v1665
  %2164 = vmatmul.mubr.f32.gmra.mxu0 %v1410
  %v2165 = vpop.f32.mrf.mxu0
  %v2166 = vadd.f32 0.0, %v2165
  %v2167 = vpop.f32.mrf.mxu0
  %v2168 = vadd.f32 0.0, %v2167
  %2169 = vmatprep.mubr.f32.mxu0 %v1668
  %2170 = vmatmul.mubr.f32.gmra.mxu0 %v1412
  %v2171 = vpop.f32.mrf.mxu0
  %v2172 = vadd.f32 0.0, %v2171
  %v2173 = vpop.f32.mrf.mxu0
  %v2174 = vadd.f32 0.0, %v2173
  %2175 = vmatprep.mubr.f32.mxu0 %v1671
  %2176 = vmatmul.mubr.f32.gmra.mxu0 %v1414
  %v2177 = vpop.f32.mrf.mxu0
  %v2178 = vadd.f32 0.0, %v2177
  %v2179 = vpop.f32.mrf.mxu0
  %v2180 = vadd.f32 0.0, %v2179
  %2181 = vmatprep.mubr.f32.mxu0 %v1674
  %2182 = vmatmul.mubr.f32.gmra.mxu0 %v1416
  %v2183 = vpop.f32.mrf.mxu0
  %v2184 = vadd.f32 0.0, %v2183
  %v2185 = vpop.f32.mrf.mxu0
  %v2186 = vadd.f32 0.0, %v2185
  %2187 = vmatprep.mubr.f32.mxu0 %v1677
  %2188 = vmatmul.mubr.f32.gmra.mxu0 %v1418
  %v2189 = vpop.f32.mrf.mxu0
  %v2190 = vadd.f32 0.0, %v2189
  %v2191 = vpop.f32.mrf.mxu0
  %v2192 = vadd.f32 0.0, %v2191
  %2193 = vmatprep.mubr.f32.mxu0 %v1680
  %2194 = vmatmul.mubr.f32.gmra.mxu0 %v1420
  %v2195 = vpop.f32.mrf.mxu0
  %v2196 = vadd.f32 0.0, %v2195
  %v2197 = vpop.f32.mrf.mxu0
  %v2198 = vadd.f32 0.0, %v2197
  %2199 = vmatprep.mubr.f32.mxu0 %v1683
  %2200 = vmatmul.mubr.f32.gmra.mxu0 %v1422
  %v2201 = vpop.f32.mrf.mxu0
  %v2202 = vadd.f32 0.0, %v2201
  %v2203 = vpop.f32.mrf.mxu0
  %v2204 = vadd.f32 0.0, %v2203
  %2205 = vmatprep.mubr.f32.mxu0 %v1686
  %2206 = vmatmul.mubr.f32.gmra.mxu0 %v1424
  %v2207 = vpop.f32.mrf.mxu0
  %v2208 = vadd.f32 0.0, %v2207
  %v2209 = vpop.f32.mrf.mxu0
  %v2210 = vadd.f32 0.0, %v2209
  %2211 = vmatprep.mubr.f32.mxu0 %v1689
  %2212 = vmatmul.mubr.f32.gmra.mxu0 %v1426
  %v2213 = vpop.f32.mrf.mxu0
  %v2214 = vadd.f32 0.0, %v2213
  %v2215 = vpop.f32.mrf.mxu0
  %v2216 = vadd.f32 0.0, %v2215
  %2217 = vmatprep.mubr.f32.mxu0 %v1692
  %2218 = vmatmul.mubr.f32.gmra.mxu0 %v1428
  %v2219 = vpop.f32.mrf.mxu0
  %v2220 = vadd.f32 0.0, %v2219
  %v2221 = vpop.f32.mrf.mxu0
  %v2222 = vadd.f32 0.0, %v2221
  %2223 = vmatprep.mubr.f32.mxu0 %v1695
  %2224 = vmatmul.mubr.f32.gmra.mxu0 %v1430
  %v2225 = vpop.f32.mrf.mxu0
  %v2226 = vadd.f32 0.0, %v2225
  %v2227 = vpop.f32.mrf.mxu0
  %v2228 = vadd.f32 0.0, %v2227
  %2229 = vmatprep.mubr.f32.mxu0 %v1698
  %2230 = vmatmul.mubr.f32.gmra.mxu0 %v1432
  %v2231 = vpop.f32.mrf.mxu0
  %v2232 = vadd.f32 0.0, %v2231
  %v2233 = vpop.f32.mrf.mxu0
  %v2234 = vadd.f32 0.0, %v2233
  %2235 = vmatprep.mubr.f32.mxu0 %v1701
  %2236 = vmatmul.mubr.f32.gmra.mxu0 %v1434
  %v2237 = vpop.f32.mrf.mxu0
  %v2238 = vadd.f32 0.0, %v2237
  %v2239 = vpop.f32.mrf.mxu0
  %v2240 = vadd.f32 0.0, %v2239
  %2241 = vmatprep.mubr.f32.mxu0 %v1704
  %2242 = vmatmul.mubr.f32.gmra.mxu0 %v1436
  %v2243 = vpop.f32.mrf.mxu0
  %v2244 = vadd.f32 0.0, %v2243
  %v2245 = vpop.f32.mrf.mxu0
  %v2246 = vadd.f32 0.0, %v2245
  %2247 = vmatprep.mubr.f32.mxu0 %v1707
  %2248 = vmatmul.mubr.f32.gmra.mxu0 %v1438
  %v2249 = vpop.f32.mrf.mxu0
  %v2250 = vadd.f32 0.0, %v2249
  %v2251 = vpop.f32.mrf.mxu0
  %v2252 = vadd.f32 0.0, %v2251
  %2253 = vmatprep.mubr.f32.mxu0 %v1710
  %2254 = vmatmul.mubr.f32.gmra.mxu0 %v1440
  %v2255 = vpop.f32.mrf.mxu0
  %v2256 = vadd.f32 0.0, %v2255
  %v2257 = vpop.f32.mrf.mxu0
  %v2258 = vadd.f32 0.0, %v2257
  %2259 = vmatprep.mubr.f32.mxu0 %v1713
  %2260 = vmatmul.mubr.f32.gmra.mxu0 %v1442
  %v2261 = vpop.f32.mrf.mxu0
  %v2262 = vadd.f32 0.0, %v2261
  %v2263 = vpop.f32.mrf.mxu0
  %v2264 = vadd.f32 0.0, %v2263
  %2265 = vmatprep.mubr.f32.mxu0 %v1716
  %2266 = vmatmul.mubr.f32.gmra.mxu0 %v1444
  %v2267 = vpop.f32.mrf.mxu0
  %v2268 = vadd.f32 0.0, %v2267
  %v2269 = vpop.f32.mrf.mxu0
  %v2270 = vadd.f32 0.0, %v2269
  %2271 = vmatprep.mubr.f32.mxu0 %v1719
  %2272 = vmatmul.mubr.f32.gmra.mxu0 %v1446
  %v2273 = vpop.f32.mrf.mxu0
  %v2274 = vadd.f32 0.0, %v2273
  %v2275 = vpop.f32.mrf.mxu0
  %v2276 = vadd.f32 0.0, %v2275
  %2277 = vmatprep.mubr.f32.mxu0 %v1722
  %2278 = vmatmul.mubr.f32.gmra.mxu0 %v1448
  %v2279 = vpop.f32.mrf.mxu0
  %v2280 = vadd.f32 0.0, %v2279
  %v2281 = vpop.f32.mrf.mxu0
  %v2282 = vadd.f32 0.0, %v2281
  %2283 = vmatprep.mubr.f32.mxu0 %v1725
  %2284 = vmatmul.mubr.f32.gmra.mxu0 %v1450
  %v2285 = vpop.f32.mrf.mxu0
  %v2286 = vadd.f32 0.0, %v2285
  %v2287 = vpop.f32.mrf.mxu0
  %v2288 = vadd.f32 0.0, %v2287
  %2289 = vmatprep.mubr.f32.mxu0 %v1728
  %2290 = vmatmul.mubr.f32.gmra.mxu0 %v1452
  %v2291 = vpop.f32.mrf.mxu0
  %v2292 = vadd.f32 0.0, %v2291
  %v2293 = vpop.f32.mrf.mxu0
  %v2294 = vadd.f32 0.0, %v2293
  %2295 = vmatprep.mubr.f32.mxu0 %v1731
  %2296 = vmatmul.mubr.f32.gmra.mxu0 %v1454
  %v2297 = vpop.f32.mrf.mxu0
  %v2298 = vadd.f32 0.0, %v2297
  %v2299 = vpop.f32.mrf.mxu0
  %v2300 = vadd.f32 0.0, %v2299
  %2301 = vmatprep.mubr.f32.mxu0 %v1734
  %2302 = vmatmul.mubr.f32.gmra.mxu0 %v1456
  %v2303 = vpop.f32.mrf.mxu0
  %v2304 = vadd.f32 0.0, %v2303
  %v2305 = vpop.f32.mrf.mxu0
  %v2306 = vadd.f32 0.0, %v2305
  %2307 = vmatprep.mubr.f32.mxu0 %v1737
  %2308 = vmatmul.mubr.f32.gmra.mxu0 %v1458
  %v2309 = vpop.f32.mrf.mxu0
  %v2310 = vadd.f32 0.0, %v2309
  %v2311 = vpop.f32.mrf.mxu0
  %v2312 = vadd.f32 0.0, %v2311
  %2313 = vmatprep.mubr.f32.mxu0 %v1740
  %2314 = vmatmul.mubr.f32.gmra.mxu0 %v1460
  %v2315 = vpop.f32.mrf.mxu0
  %v2316 = vadd.f32 0.0, %v2315
  %v2317 = vpop.f32.mrf.mxu0
  %v2318 = vadd.f32 0.0, %v2317
  %2319 = vmatprep.mubr.f32.mxu0 %v1743
  %2320 = vmatmul.mubr.f32.gmra.mxu0 %v1462
  %v2321 = vpop.f32.mrf.mxu0
  %v2322 = vadd.f32 0.0, %v2321
  %v2323 = vpop.f32.mrf.mxu0
  %v2324 = vadd.f32 0.0, %v2323
  %2325 = vmatprep.mubr.f32.mxu0 %v1746
  %2326 = vmatmul.mubr.f32.gmra.mxu0 %v1464
  %v2327 = vpop.f32.mrf.mxu0
  %v2328 = vadd.f32 0.0, %v2327
  %v2329 = vpop.f32.mrf.mxu0
  %v2330 = vadd.f32 0.0, %v2329
  %2331 = vmatprep.mubr.f32.mxu0 %v1749
  %2332 = vmatmul.mubr.f32.gmra.mxu0 %v1466
  %v2333 = vpop.f32.mrf.mxu0
  %v2334 = vadd.f32 0.0, %v2333
  %v2335 = vpop.f32.mrf.mxu0
  %v2336 = vadd.f32 0.0, %v2335
  %2337 = vmatprep.mubr.f32.mxu0 %v1752
  %2338 = vmatmul.mubr.f32.gmra.mxu0 %v1468
  %v2339 = vpop.f32.mrf.mxu0
  %v2340 = vadd.f32 0.0, %v2339
  %v2341 = vpop.f32.mrf.mxu0
  %v2342 = vadd.f32 0.0, %v2341
  %2343 = vmatprep.mubr.f32.mxu0 %v1755
  %2344 = vmatmul.mubr.f32.gmra.mxu0 %v1470
  %v2345 = vpop.f32.mrf.mxu0
  %v2346 = vadd.f32 0.0, %v2345
  %v2347 = vpop.f32.mrf.mxu0
  %v2348 = vadd.f32 0.0, %v2347
  %2349 = vmatprep.mubr.f32.mxu0 %v1758
  %2350 = vmatmul.mubr.f32.gmra.mxu0 %v1472
  %v2351 = vpop.f32.mrf.mxu0
  %v2352 = vadd.f32 0.0, %v2351
  %v2353 = vpop.f32.mrf.mxu0
  %v2354 = vadd.f32 0.0, %v2353
  %2355 = vmatprep.mubr.f32.mxu0 %v1761
  %2356 = vmatmul.mubr.f32.gmra.mxu0 %v1474
  %v2357 = vpop.f32.mrf.mxu0
  %v2358 = vadd.f32 0.0, %v2357
  %v2359 = vpop.f32.mrf.mxu0
  %v2360 = vadd.f32 0.0, %v2359
  %2361 = vmatprep.mubr.f32.mxu0 %v1764
  %2362 = vmatmul.mubr.f32.gmra.mxu0 %v1476
  %v2363 = vpop.f32.mrf.mxu0
  %v2364 = vadd.f32 0.0, %v2363
  %v2365 = vpop.f32.mrf.mxu0
  %v2366 = vadd.f32 0.0, %v2365
  %2367 = vmatprep.mubr.f32.mxu0 %v1767
  %2368 = vmatmul.mubr.f32.gmra.mxu0 %v1478
  %v2369 = vpop.f32.mrf.mxu0
  %v2370 = vadd.f32 0.0, %v2369
  %v2371 = vpop.f32.mrf.mxu0
  %v2372 = vadd.f32 0.0, %v2371
  %2373 = vmatprep.mubr.f32.mxu0 %v1770
  %2374 = vmatmul.mubr.f32.gmra.mxu0 %v1480
  %v2375 = vpop.f32.mrf.mxu0
  %v2376 = vadd.f32 0.0, %v2375
  %v2377 = vpop.f32.mrf.mxu0
  %v2378 = vadd.f32 0.0, %v2377
  %2379 = vmatprep.mubr.f32.mxu0 %v1773
  %2380 = vmatmul.mubr.f32.gmra.mxu0 %v1482
  %v2381 = vpop.f32.mrf.mxu0
  %v2382 = vadd.f32 0.0, %v2381
  %v2383 = vpop.f32.mrf.mxu0
  %v2384 = vadd.f32 0.0, %v2383
  %2385 = vmatprep.mubr.f32.mxu0 %v1776
  %2386 = vmatmul.mubr.f32.gmra.mxu0 %v1484
  %v2387 = vpop.f32.mrf.mxu0
  %v2388 = vadd.f32 0.0, %v2387
  %v2389 = vpop.f32.mrf.mxu0
  %v2390 = vadd.f32 0.0, %v2389
  %2391 = vmatprep.mubr.f32.mxu0 %v1779
  %2392 = vmatmul.mubr.f32.gmra.mxu0 %v1486
  %v2393 = vpop.f32.mrf.mxu0
  %v2394 = vadd.f32 0.0, %v2393
  %v2395 = vpop.f32.mrf.mxu0
  %v2396 = vadd.f32 0.0, %v2395
  %2397 = vmatprep.mubr.f32.mxu0 %v1782
  %2398 = vmatmul.mubr.f32.gmra.mxu0 %v1488
  %v2399 = vpop.f32.mrf.mxu0
  %v2400 = vadd.f32 0.0, %v2399
  %v2401 = vpop.f32.mrf.mxu0
  %v2402 = vadd.f32 0.0, %v2401
  %2403 = vmatprep.mubr.f32.mxu0 %v1785
  %2404 = vmatmul.mubr.f32.gmra.mxu0 %v1490
  %v2405 = vpop.f32.mrf.mxu0
  %v2406 = vadd.f32 0.0, %v2405
  %v2407 = vpop.f32.mrf.mxu0
  %v2408 = vadd.f32 0.0, %v2407
  %2409 = vmatprep.mubr.f32.mxu0 %v1788
  %2410 = vmatmul.mubr.f32.gmra.mxu0 %v1492
  %v2411 = vpop.f32.mrf.mxu0
  %v2412 = vadd.f32 0.0, %v2411
  %v2413 = vpop.f32.mrf.mxu0
  %v2414 = vadd.f32 0.0, %v2413
  %2415 = vmatprep.mubr.f32.mxu0 %v1791
  %2416 = vmatmul.mubr.f32.gmra.mxu0 %v1494
  %v2417 = vpop.f32.mrf.mxu0
  %v2418 = vadd.f32 0.0, %v2417
  %v2419 = vpop.f32.mrf.mxu0
  %v2420 = vadd.f32 0.0, %v2419
  %2421 = vmatprep.mubr.f32.mxu0 %v1794
  %2422 = vmatmul.mubr.f32.gmra.mxu0 %v1496
  %v2423 = vpop.f32.mrf.mxu0
  %v2424 = vadd.f32 0.0, %v2423
  %v2425 = vpop.f32.mrf.mxu0
  %v2426 = vadd.f32 0.0, %v2425
  %2427 = vmatprep.mubr.f32.mxu0 %v1797
  %2428 = vmatmul.mubr.f32.gmra.mxu0 %v1498
  %v2429 = vpop.f32.mrf.mxu0
  %v2430 = vadd.f32 0.0, %v2429
  %v2431 = vpop.f32.mrf.mxu0
  %v2432 = vadd.f32 0.0, %v2431
  %2433 = vmatprep.mubr.f32.mxu0 %v1800
  %2434 = vmatmul.mubr.f32.gmra.mxu0 %v1500
  %v2435 = vpop.f32.mrf.mxu0
  %v2436 = vadd.f32 0.0, %v2435
  %v2437 = vpop.f32.mrf.mxu0
  %v2438 = vadd.f32 0.0, %v2437
  %2439 = vmatprep.mubr.f32.mxu0 %v1803
  %2440 = vmatmul.mubr.f32.gmra.mxu0 %v1502
  %v2441 = vpop.f32.mrf.mxu0
  %v2442 = vadd.f32 0.0, %v2441
  %v2443 = vpop.f32.mrf.mxu0
  %v2444 = vadd.f32 0.0, %v2443
  %2445 = vmatprep.mubr.f32.mxu0 %v1806
  %2446 = vmatmul.mubr.f32.gmra.mxu0 %v1504
  %v2447 = vpop.f32.mrf.mxu0
  %v2448 = vadd.f32 0.0, %v2447
  %v2449 = vpop.f32.mrf.mxu0
  %v2450 = vadd.f32 0.0, %v2449
  %2451 = vmatprep.mubr.f32.mxu0 %v1809
  %2452 = vmatmul.mubr.f32.gmra.mxu0 %v1506
  %v2453 = vpop.f32.mrf.mxu0
  %v2454 = vadd.f32 0.0, %v2453
  %v2455 = vpop.f32.mrf.mxu0
  %v2456 = vadd.f32 0.0, %v2455
  %2457 = vmatprep.mubr.f32.mxu0 %v1812
  %2458 = vmatmul.mubr.f32.gmra.mxu0 %v1508
  %v2459 = vpop.f32.mrf.mxu0
  %v2460 = vadd.f32 0.0, %v2459
  %v2461 = vpop.f32.mrf.mxu0
  %v2462 = vadd.f32 0.0, %v2461
  %2463 = vmatprep.mubr.f32.mxu0 %v1815
  %2464 = vmatmul.mubr.f32.gmra.mxu0 %v1510
  %v2465 = vpop.f32.mrf.mxu0
  %v2466 = vadd.f32 0.0, %v2465
  %v2467 = vpop.f32.mrf.mxu0
  %v2468 = vadd.f32 0.0, %v2467
  %2469 = vmatprep.mubr.f32.mxu0 %v1818
  %2470 = vmatmul.mubr.f32.gmra.mxu0 %v1512
  %v2471 = vpop.f32.mrf.mxu0
  %v2472 = vadd.f32 0.0, %v2471
  %v2473 = vpop.f32.mrf.mxu0
  %v2474 = vadd.f32 0.0, %v2473
  %2475 = vmatprep.mubr.f32.mxu0 %v1821
  %2476 = vmatmul.mubr.f32.gmra.mxu0 %v1514
  %v2477 = vpop.f32.mrf.mxu0
  %v2478 = vadd.f32 0.0, %v2477
  %v2479 = vpop.f32.mrf.mxu0
  %v2480 = vadd.f32 0.0, %v2479
  %2481 = vmatprep.mubr.f32.mxu0 %v1824
  %2482 = vmatmul.mubr.f32.gmra.mxu0 %v1516
  %v2483 = vpop.f32.mrf.mxu0
  %v2484 = vadd.f32 0.0, %v2483
  %v2485 = vpop.f32.mrf.mxu0
  %v2486 = vadd.f32 0.0, %v2485
  %2487 = vmatprep.mubr.f32.mxu0 %v1827
  %2488 = vmatmul.mubr.f32.gmra.mxu0 %v1518
  %v2489 = vpop.f32.mrf.mxu0
  %v2490 = vadd.f32 0.0, %v2489
  %v2491 = vpop.f32.mrf.mxu0
  %v2492 = vadd.f32 0.0, %v2491
  %2493 = vmatprep.mubr.f32.mxu0 %v1830
  %2494 = vmatmul.mubr.f32.gmra.mxu0 %v1520
  %v2495 = vpop.f32.mrf.mxu0
  %v2496 = vadd.f32 0.0, %v2495
  %v2497 = vpop.f32.mrf.mxu0
  %v2498 = vadd.f32 0.0, %v2497
  %2499 = vmatprep.mubr.f32.mxu0 %v1833
  %2500 = vmatmul.mubr.f32.gmra.mxu0 %v1522
  %v2501 = vpop.f32.mrf.mxu0
  %v2502 = vadd.f32 0.0, %v2501
  %v2503 = vpop.f32.mrf.mxu0
  %v2504 = vadd.f32 0.0, %v2503
  %2505 = vmatprep.mubr.f32.mxu0 %v1836
  %2506 = vmatmul.mubr.f32.gmra.mxu0 %v1524
  %v2507 = vpop.f32.mrf.mxu0
  %v2508 = vadd.f32 0.0, %v2507
  %v2509 = vpop.f32.mrf.mxu0
  %v2510 = vadd.f32 0.0, %v2509
  %2511 = vmatprep.mubr.f32.mxu0 %v1839
  %2512 = vmatmul.mubr.f32.gmra.mxu0 %v1526
  %v2513 = vpop.f32.mrf.mxu0
  %v2514 = vadd.f32 0.0, %v2513
  %v2515 = vpop.f32.mrf.mxu0
  %v2516 = vadd.f32 0.0, %v2515
  %2517 = vmatprep.mubr.f32.mxu0 %v1842
  %2518 = vmatmul.mubr.f32.gmra.mxu0 %v1528
  %v2519 = vpop.f32.mrf.mxu0
  %v2520 = vadd.f32 0.0, %v2519
  %v2521 = vpop.f32.mrf.mxu0
  %v2522 = vadd.f32 0.0, %v2521
  %2523 = vmatprep.mubr.f32.mxu0 %v1845
  %2524 = vmatmul.mubr.f32.gmra.mxu0 %v1530
  %v2525 = vpop.f32.mrf.mxu0
  %v2526 = vadd.f32 0.0, %v2525
  %v2527 = vpop.f32.mrf.mxu0
  %v2528 = vadd.f32 0.0, %v2527
  %2529 = vmatprep.mubr.f32.mxu0 %v1848
  %2530 = vmatmul.mubr.f32.gmra.mxu0 %v1532
  %v2531 = vpop.f32.mrf.mxu0
  %v2532 = vadd.f32 0.0, %v2531
  %v2533 = vpop.f32.mrf.mxu0
  %v2534 = vadd.f32 0.0, %v2533
  %2535 = vmatprep.mubr.f32.mxu0 %v1851
  %2536 = vmatmul.mubr.f32.gmra.mxu0 %v1534
  %v2537 = vpop.f32.mrf.mxu0
  %v2538 = vadd.f32 0.0, %v2537
  %v2539 = vpop.f32.mrf.mxu0
  %v2540 = vadd.f32 0.0, %v2539
  %2541 = vmatprep.mubr.f32.mxu0 %v1854
  %2542 = vmatmul.mubr.f32.gmra.mxu0 %v1536
  %v2543 = vpop.f32.mrf.mxu0
  %v2544 = vadd.f32 0.0, %v2543
  %v2545 = vpop.f32.mrf.mxu0
  %v2546 = vadd.f32 0.0, %v2545
  %2547 = vmatprep.mubr.f32.mxu0 %v1857
  %2548 = vmatmul.mubr.f32.gmra.mxu0 %v1538
  %v2549 = vpop.f32.mrf.mxu0
  %v2550 = vadd.f32 0.0, %v2549
  %v2551 = vpop.f32.mrf.mxu0
  %v2552 = vadd.f32 0.0, %v2551
  %2553 = vmatprep.mubr.f32.mxu0 %v1860
  %2554 = vmatmul.mubr.f32.gmra.mxu0 %v1540
  %v2555 = vpop.f32.mrf.mxu0
  %v2556 = vadd.f32 0.0, %v2555
  %v2557 = vpop.f32.mrf.mxu0
  %v2558 = vadd.f32 0.0, %v2557
  %2559 = vmatprep.mubr.f32.mxu0 %v1863
  %2560 = vmatmul.mubr.f32.gmra.mxu0 %v1542
  %v2561 = vpop.f32.mrf.mxu0
  %v2562 = vadd.f32 0.0, %v2561
  %v2563 = vpop.f32.mrf.mxu0
  %v2564 = vadd.f32 0.0, %v2563
  %2565 = vmatprep.mubr.f32.mxu0 %v1866
  %2566 = vmatmul.mubr.f32.gmra.mxu0 %v1544
  %v2567 = vpop.f32.mrf.mxu0
  %v2568 = vadd.f32 0.0, %v2567
  %v2569 = vpop.f32.mrf.mxu0
  %v2570 = vadd.f32 0.0, %v2569
  %2571 = vmatprep.mubr.f32.mxu0 %v1869
  %2572 = vmatmul.mubr.f32.gmra.mxu0 %v1546
  %v2573 = vpop.f32.mrf.mxu0
  %v2574 = vadd.f32 0.0, %v2573
  %v2575 = vpop.f32.mrf.mxu0
  %v2576 = vadd.f32 0.0, %v2575
  %2577 = vmatprep.mubr.f32.mxu0 %v1872
  %2578 = vmatmul.mubr.f32.gmra.mxu0 %v1548
  %v2579 = vpop.f32.mrf.mxu0
  %v2580 = vadd.f32 0.0, %v2579
  %v2581 = vpop.f32.mrf.mxu0
  %v2582 = vadd.f32 0.0, %v2581
  %2583 = vmatprep.mubr.f32.mxu0 %v1875
  %2584 = vmatmul.mubr.f32.gmra.mxu0 %v1550
  %v2585 = vpop.f32.mrf.mxu0
  %v2586 = vadd.f32 0.0, %v2585
  %v2587 = vpop.f32.mrf.mxu0
  %v2588 = vadd.f32 0.0, %v2587
  %2589 = vdwg.mxu0
  %2590 = vst [vmem:[%s6] sm:$0xff] %v1944
  %2591 = vst.msk [vmem:[%s6 + $0x8] sm:$0xff] %vm704, %v1946
  %2592 = vst [vmem:[%s6 + $0x10] sm:$0xff] %v1950
  %2593 = vst.msk [vmem:[%s6 + $0x18] sm:$0xff] %vm704, %v1952
  %2594 = vst [vmem:[%s6 + $0x20] sm:$0xff] %v1956
  %2595 = vst.msk [vmem:[%s6 + $0x28] sm:$0xff] %vm704, %v1958
  %2596 = vst [vmem:[%s6 + $0x30] sm:$0xff] %v1962
  %2597 = vst.msk [vmem:[%s6 + $0x38] sm:$0xff] %vm704, %v1964
  %2598 = vst [vmem:[%s6 + $0x40] sm:$0xff] %v1968
  %2599 = vst.msk [vmem:[%s6 + $0x48] sm:$0xff] %vm704, %v1970
  %2600 = vst [vmem:[%s6 + $0x50] sm:$0xff] %v1974
  %2601 = vst.msk [vmem:[%s6 + $0x58] sm:$0xff] %vm704, %v1976
  %2602 = vst [vmem:[%s6 + $0x60] sm:$0xff] %v1980
  %2603 = vst.msk [vmem:[%s6 + $0x68] sm:$0xff] %vm704, %v1982
  %2604 = vst [vmem:[%s6 + $0x70] sm:$0xff] %v1986
  %2605 = vst.msk [vmem:[%s6 + $0x78] sm:$0xff] %vm704, %v1988
  %2606 = vst [vmem:[%s6 + $0x80] sm:$0xff] %v1992
  %2607 = vst.msk [vmem:[%s6 + $0x88] sm:$0xff] %vm704, %v1994
  %2608 = vst [vmem:[%s6 + $0x90] sm:$0xff] %v1998
  %2609 = vst.msk [vmem:[%s6 + $0x98] sm:$0xff] %vm704, %v2000
  %2610 = vst [vmem:[%s6 + $0xa0] sm:$0xff] %v2004
  %2611 = vst.msk [vmem:[%s6 + $0xa8] sm:$0xff] %vm704, %v2006
  %2612 = vst [vmem:[%s6 + $0xb0] sm:$0xff] %v2010
  %2613 = vst.msk [vmem:[%s6 + $0xb8] sm:$0xff] %vm704, %v2012
  %2614 = vst [vmem:[%s6 + $0xc0] sm:$0xff] %v2016
  %2615 = vst.msk [vmem:[%s6 + $0xc8] sm:$0xff] %vm704, %v2018
  %2616 = vst [vmem:[%s6 + $0xd0] sm:$0xff] %v2022
  %2617 = vst.msk [vmem:[%s6 + $0xd8] sm:$0xff] %vm704, %v2024
  %2618 = vst [vmem:[%s6 + $0xe0] sm:$0xff] %v2028
  %2619 = vst.msk [vmem:[%s6 + $0xe8] sm:$0xff] %vm704, %v2030
  %2620 = vst [vmem:[%s6 + $0xf0] sm:$0xff] %v2034
  %2621 = vst.msk [vmem:[%s6 + $0xf8] sm:$0xff] %vm704, %v2036
  %2622 = vst [vmem:[%s6 + $0x100] sm:$0xff] %v2040
  %2623 = vst.msk [vmem:[%s6 + $0x108] sm:$0xff] %vm704, %v2042
  %2624 = vst [vmem:[%s6 + $0x110] sm:$0xff] %v2046
  %2625 = vst.msk [vmem:[%s6 + $0x118] sm:$0xff] %vm704, %v2048
  %2626 = vst [vmem:[%s6 + $0x120] sm:$0xff] %v2052
  %2627 = vst.msk [vmem:[%s6 + $0x128] sm:$0xff] %vm704, %v2054
  %2628 = vst [vmem:[%s6 + $0x130] sm:$0xff] %v2058
  %2629 = vst.msk [vmem:[%s6 + $0x138] sm:$0xff] %vm704, %v2060
  %2630 = vst [vmem:[%s6 + $0x140] sm:$0xff] %v2064
  %2631 = vst.msk [vmem:[%s6 + $0x148] sm:$0xff] %vm704, %v2066
  %2632 = vst [vmem:[%s6 + $0x150] sm:$0xff] %v2070
  %2633 = vst.msk [vmem:[%s6 + $0x158] sm:$0xff] %vm704, %v2072
  %2634 = vst [vmem:[%s6 + $0x160] sm:$0xff] %v2076
  %2635 = vst.msk [vmem:[%s6 + $0x168] sm:$0xff] %vm704, %v2078
  %2636 = vst [vmem:[%s6 + $0x170] sm:$0xff] %v2082
  %2637 = vst.msk [vmem:[%s6 + $0x178] sm:$0xff] %vm704, %v2084
  %2638 = vst [vmem:[%s6 + $0x180] sm:$0xff] %v2088
  %2639 = vst.msk [vmem:[%s6 + $0x188] sm:$0xff] %vm704, %v2090
  %2640 = vst [vmem:[%s6 + $0x190] sm:$0xff] %v2094
  %2641 = vst.msk [vmem:[%s6 + $0x198] sm:$0xff] %vm704, %v2096
  %2642 = vst [vmem:[%s6 + $0x1a0] sm:$0xff] %v2100
  %2643 = vst.msk [vmem:[%s6 + $0x1a8] sm:$0xff] %vm704, %v2102
  %2644 = vst [vmem:[%s6 + $0x1b0] sm:$0xff] %v2106
  %2645 = vst.msk [vmem:[%s6 + $0x1b8] sm:$0xff] %vm704, %v2108
  %2646 = vst [vmem:[%s6 + $0x1c0] sm:$0xff] %v2112
  %2647 = vst.msk [vmem:[%s6 + $0x1c8] sm:$0xff] %vm704, %v2114
  %2648 = vst [vmem:[%s6 + $0x1d0] sm:$0xff] %v2118
  %2649 = vst.msk [vmem:[%s6 + $0x1d8] sm:$0xff] %vm704, %v2120
  %2650 = vst [vmem:[%s6 + $0x1e0] sm:$0xff] %v2124
  %2651 = vst.msk [vmem:[%s6 + $0x1e8] sm:$0xff] %vm704, %v2126
  %2652 = vst [vmem:[%s6 + $0x1f0] sm:$0xff] %v2130
  %2653 = vst.msk [vmem:[%s6 + $0x1f8] sm:$0xff] %vm704, %v2132
  %2654 = vst [vmem:[%s6 + $0x200] sm:$0xff] %v2136
  %2655 = vst.msk [vmem:[%s6 + $0x208] sm:$0xff] %vm704, %v2138
  %2656 = vst [vmem:[%s6 + $0x210] sm:$0xff] %v2142
  %2657 = vst.msk [vmem:[%s6 + $0x218] sm:$0xff] %vm704, %v2144
  %2658 = vst [vmem:[%s6 + $0x220] sm:$0xff] %v2148
  %2659 = vst.msk [vmem:[%s6 + $0x228] sm:$0xff] %vm704, %v2150
  %2660 = vst [vmem:[%s6 + $0x230] sm:$0xff] %v2154
  %2661 = vst.msk [vmem:[%s6 + $0x238] sm:$0xff] %vm704, %v2156
  %2662 = vst [vmem:[%s6 + $0x240] sm:$0xff] %v2160
  %2663 = vst.msk [vmem:[%s6 + $0x248] sm:$0xff] %vm704, %v2162
  %2664 = vst [vmem:[%s6 + $0x250] sm:$0xff] %v2166
  %2665 = vst.msk [vmem:[%s6 + $0x258] sm:$0xff] %vm704, %v2168
  %2666 = vst [vmem:[%s6 + $0x260] sm:$0xff] %v2172
  %2667 = vst.msk [vmem:[%s6 + $0x268] sm:$0xff] %vm704, %v2174
  %2668 = vst [vmem:[%s6 + $0x270] sm:$0xff] %v2178
  %2669 = vst.msk [vmem:[%s6 + $0x278] sm:$0xff] %vm704, %v2180
  %2670 = vst [vmem:[%s6 + $0x280] sm:$0xff] %v2184
  %2671 = vst.msk [vmem:[%s6 + $0x288] sm:$0xff] %vm704, %v2186
  %2672 = vst [vmem:[%s6 + $0x290] sm:$0xff] %v2190
  %2673 = vst.msk [vmem:[%s6 + $0x298] sm:$0xff] %vm704, %v2192
  %2674 = vst [vmem:[%s6 + $0x2a0] sm:$0xff] %v2196
  %2675 = vst.msk [vmem:[%s6 + $0x2a8] sm:$0xff] %vm704, %v2198
  %2676 = vst [vmem:[%s6 + $0x2b0] sm:$0xff] %v2202
  %2677 = vst.msk [vmem:[%s6 + $0x2b8] sm:$0xff] %vm704, %v2204
  %2678 = vst [vmem:[%s6 + $0x2c0] sm:$0xff] %v2208
  %2679 = vst.msk [vmem:[%s6 + $0x2c8] sm:$0xff] %vm704, %v2210
  %2680 = vst [vmem:[%s6 + $0x2d0] sm:$0xff] %v2214
  %2681 = vst.msk [vmem:[%s6 + $0x2d8] sm:$0xff] %vm704, %v2216
  %2682 = vst [vmem:[%s6 + $0x2e0] sm:$0xff] %v2220
  %2683 = vst.msk [vmem:[%s6 + $0x2e8] sm:$0xff] %vm704, %v2222
  %2684 = vst [vmem:[%s6 + $0x2f0] sm:$0xff] %v2226
  %2685 = vst.msk [vmem:[%s6 + $0x2f8] sm:$0xff] %vm704, %v2228
  %2686 = vst [vmem:[%s6 + $0x300] sm:$0xff] %v2232
  %2687 = vst.msk [vmem:[%s6 + $0x308] sm:$0xff] %vm704, %v2234
  %2688 = vst [vmem:[%s6 + $0x310] sm:$0xff] %v2238
  %2689 = vst.msk [vmem:[%s6 + $0x318] sm:$0xff] %vm704, %v2240
  %2690 = vst [vmem:[%s6 + $0x320] sm:$0xff] %v2244
  %2691 = vst.msk [vmem:[%s6 + $0x328] sm:$0xff] %vm704, %v2246
  %2692 = vst [vmem:[%s6 + $0x330] sm:$0xff] %v2250
  %2693 = vst.msk [vmem:[%s6 + $0x338] sm:$0xff] %vm704, %v2252
  %2694 = vst [vmem:[%s6 + $0x340] sm:$0xff] %v2256
  %2695 = vst.msk [vmem:[%s6 + $0x348] sm:$0xff] %vm704, %v2258
  %2696 = vst [vmem:[%s6 + $0x350] sm:$0xff] %v2262
  %2697 = vst.msk [vmem:[%s6 + $0x358] sm:$0xff] %vm704, %v2264
  %2698 = vst [vmem:[%s6 + $0x360] sm:$0xff] %v2268
  %2699 = vst.msk [vmem:[%s6 + $0x368] sm:$0xff] %vm704, %v2270
  %2700 = vst [vmem:[%s6 + $0x370] sm:$0xff] %v2274
  %2701 = vst.msk [vmem:[%s6 + $0x378] sm:$0xff] %vm704, %v2276
  %2702 = vst [vmem:[%s6 + $0x380] sm:$0xff] %v2280
  %2703 = vst.msk [vmem:[%s6 + $0x388] sm:$0xff] %vm704, %v2282
  %2704 = vst [vmem:[%s6 + $0x390] sm:$0xff] %v2286
  %2705 = vst.msk [vmem:[%s6 + $0x398] sm:$0xff] %vm704, %v2288
  %2706 = vst [vmem:[%s6 + $0x3a0] sm:$0xff] %v2292
  %2707 = vst.msk [vmem:[%s6 + $0x3a8] sm:$0xff] %vm704, %v2294
  %2708 = vst [vmem:[%s6 + $0x3b0] sm:$0xff] %v2298
  %2709 = vst.msk [vmem:[%s6 + $0x3b8] sm:$0xff] %vm704, %v2300
  %2710 = vst [vmem:[%s6 + $0x3c0] sm:$0xff] %v2304
  %2711 = vst.msk [vmem:[%s6 + $0x3c8] sm:$0xff] %vm704, %v2306
  %2712 = vst [vmem:[%s6 + $0x3d0] sm:$0xff] %v2310
  %2713 = vst.msk [vmem:[%s6 + $0x3d8] sm:$0xff] %vm704, %v2312
  %2714 = vst [vmem:[%s6 + $0x3e0] sm:$0xff] %v2316
  %2715 = vst.msk [vmem:[%s6 + $0x3e8] sm:$0xff] %vm704, %v2318
  %2716 = vst [vmem:[%s6 + $0x3f0] sm:$0xff] %v2322
  %2717 = vst.msk [vmem:[%s6 + $0x3f8] sm:$0xff] %vm704, %v2324
  %2718 = vst [vmem:[%s6 + $0x400] sm:$0xff] %v2328
  %2719 = vst.msk [vmem:[%s6 + $0x408] sm:$0xff] %vm704, %v2330
  %2720 = vst [vmem:[%s6 + $0x410] sm:$0xff] %v2334
  %2721 = vst.msk [vmem:[%s6 + $0x418] sm:$0xff] %vm704, %v2336
  %2722 = vst [vmem:[%s6 + $0x420] sm:$0xff] %v2340
  %2723 = vst.msk [vmem:[%s6 + $0x428] sm:$0xff] %vm704, %v2342
  %2724 = vst [vmem:[%s6 + $0x430] sm:$0xff] %v2346
  %2725 = vst.msk [vmem:[%s6 + $0x438] sm:$0xff] %vm704, %v2348
  %2726 = vst [vmem:[%s6 + $0x440] sm:$0xff] %v2352
  %2727 = vst.msk [vmem:[%s6 + $0x448] sm:$0xff] %vm704, %v2354
  %2728 = vst [vmem:[%s6 + $0x450] sm:$0xff] %v2358
  %2729 = vst.msk [vmem:[%s6 + $0x458] sm:$0xff] %vm704, %v2360
  %2730 = vst [vmem:[%s6 + $0x460] sm:$0xff] %v2364
  %2731 = vst.msk [vmem:[%s6 + $0x468] sm:$0xff] %vm704, %v2366
  %2732 = vst [vmem:[%s6 + $0x470] sm:$0xff] %v2370
  %2733 = vst.msk [vmem:[%s6 + $0x478] sm:$0xff] %vm704, %v2372
  %2734 = vst [vmem:[%s6 + $0x480] sm:$0xff] %v2376
  %2735 = vst.msk [vmem:[%s6 + $0x488] sm:$0xff] %vm704, %v2378
  %2736 = vst [vmem:[%s6 + $0x490] sm:$0xff] %v2382
  %2737 = vst.msk [vmem:[%s6 + $0x498] sm:$0xff] %vm704, %v2384
  %2738 = vst [vmem:[%s6 + $0x4a0] sm:$0xff] %v2388
  %2739 = vst.msk [vmem:[%s6 + $0x4a8] sm:$0xff] %vm704, %v2390
  %2740 = vst [vmem:[%s6 + $0x4b0] sm:$0xff] %v2394
  %2741 = vst.msk [vmem:[%s6 + $0x4b8] sm:$0xff] %vm704, %v2396
  %2742 = vst [vmem:[%s6 + $0x4c0] sm:$0xff] %v2400
  %2743 = vst.msk [vmem:[%s6 + $0x4c8] sm:$0xff] %vm704, %v2402
  %2744 = vst [vmem:[%s6 + $0x4d0] sm:$0xff] %v2406
  %2745 = vst.msk [vmem:[%s6 + $0x4d8] sm:$0xff] %vm704, %v2408
  %2746 = vst [vmem:[%s6 + $0x4e0] sm:$0xff] %v2412
  %2747 = vst.msk [vmem:[%s6 + $0x4e8] sm:$0xff] %vm704, %v2414
  %2748 = vst [vmem:[%s6 + $0x4f0] sm:$0xff] %v2418
  %2749 = vst.msk [vmem:[%s6 + $0x4f8] sm:$0xff] %vm704, %v2420
  %2750 = vst [vmem:[%s6 + $0x500] sm:$0xff] %v2424
  %2751 = vst.msk [vmem:[%s6 + $0x508] sm:$0xff] %vm704, %v2426
  %2752 = vst [vmem:[%s6 + $0x510] sm:$0xff] %v2430
  %2753 = vst.msk [vmem:[%s6 + $0x518] sm:$0xff] %vm704, %v2432
  %2754 = vst [vmem:[%s6 + $0x520] sm:$0xff] %v2436
  %2755 = vst.msk [vmem:[%s6 + $0x528] sm:$0xff] %vm704, %v2438
  %2756 = vst [vmem:[%s6 + $0x530] sm:$0xff] %v2442
  %2757 = vst.msk [vmem:[%s6 + $0x538] sm:$0xff] %vm704, %v2444
  %2758 = vst [vmem:[%s6 + $0x540] sm:$0xff] %v2448
  %2759 = vst.msk [vmem:[%s6 + $0x548] sm:$0xff] %vm704, %v2450
  %2760 = vst [vmem:[%s6 + $0x550] sm:$0xff] %v2454
  %2761 = vst.msk [vmem:[%s6 + $0x558] sm:$0xff] %vm704, %v2456
  %2762 = vst [vmem:[%s6 + $0x560] sm:$0xff] %v2460
  %2763 = vst.msk [vmem:[%s6 + $0x568] sm:$0xff] %vm704, %v2462
  %2764 = vst [vmem:[%s6 + $0x570] sm:$0xff] %v2466
  %2765 = vst.msk [vmem:[%s6 + $0x578] sm:$0xff] %vm704, %v2468
  %2766 = vst [vmem:[%s6 + $0x580] sm:$0xff] %v2472
  %2767 = vst.msk [vmem:[%s6 + $0x588] sm:$0xff] %vm704, %v2474
  %2768 = vst [vmem:[%s6 + $0x590] sm:$0xff] %v2478
  %2769 = vst.msk [vmem:[%s6 + $0x598] sm:$0xff] %vm704, %v2480
  %2770 = vst [vmem:[%s6 + $0x5a0] sm:$0xff] %v2484
  %2771 = vst.msk [vmem:[%s6 + $0x5a8] sm:$0xff] %vm704, %v2486
  %2772 = vst [vmem:[%s6 + $0x5b0] sm:$0xff] %v2490
  %2773 = vst.msk [vmem:[%s6 + $0x5b8] sm:$0xff] %vm704, %v2492
  %2774 = vst [vmem:[%s6 + $0x5c0] sm:$0xff] %v2496
  %2775 = vst.msk [vmem:[%s6 + $0x5c8] sm:$0xff] %vm704, %v2498
  %2776 = vst [vmem:[%s6 + $0x5d0] sm:$0xff] %v2502
  %2777 = vst.msk [vmem:[%s6 + $0x5d8] sm:$0xff] %vm704, %v2504
  %2778 = vst [vmem:[%s6 + $0x5e0] sm:$0xff] %v2508
  %2779 = vst.msk [vmem:[%s6 + $0x5e8] sm:$0xff] %vm704, %v2510
  %2780 = vst [vmem:[%s6 + $0x5f0] sm:$0xff] %v2514
  %2781 = vst.msk [vmem:[%s6 + $0x5f8] sm:$0xff] %vm704, %v2516
  %2782 = vst [vmem:[%s6 + $0x600] sm:$0xff] %v2520
  %2783 = vst.msk [vmem:[%s6 + $0x608] sm:$0xff] %vm704, %v2522
  %2784 = vst [vmem:[%s6 + $0x610] sm:$0xff] %v2526
  %2785 = vst.msk [vmem:[%s6 + $0x618] sm:$0xff] %vm704, %v2528
  %2786 = vst [vmem:[%s6 + $0x620] sm:$0xff] %v2532
  %2787 = vst.msk [vmem:[%s6 + $0x628] sm:$0xff] %vm704, %v2534
  %2788 = vst [vmem:[%s6 + $0x630] sm:$0xff] %v2538
  %2789 = vst.msk [vmem:[%s6 + $0x638] sm:$0xff] %vm704, %v2540
  %2790 = vst [vmem:[%s6 + $0x640] sm:$0xff] %v2544
  %2791 = vst.msk [vmem:[%s6 + $0x648] sm:$0xff] %vm704, %v2546
  %2792 = vst [vmem:[%s6 + $0x650] sm:$0xff] %v2550
  %2793 = vst.msk [vmem:[%s6 + $0x658] sm:$0xff] %vm704, %v2552
  %2794 = vst [vmem:[%s6 + $0x660] sm:$0xff] %v2556
  %2795 = vst.msk [vmem:[%s6 + $0x668] sm:$0xff] %vm704, %v2558
  %2796 = vst [vmem:[%s6 + $0x670] sm:$0xff] %v2562
  %2797 = vst.msk [vmem:[%s6 + $0x678] sm:$0xff] %vm704, %v2564
  %2798 = vst [vmem:[%s6 + $0x680] sm:$0xff] %v2568
  %2799 = vst.msk [vmem:[%s6 + $0x688] sm:$0xff] %vm704, %v2570
  %2800 = vst [vmem:[%s6 + $0x690] sm:$0xff] %v2574
  %2801 = vst.msk [vmem:[%s6 + $0x698] sm:$0xff] %vm704, %v2576
  %2802 = vst [vmem:[%s6 + $0x6a0] sm:$0xff] %v2580
  %2803 = vst.msk [vmem:[%s6 + $0x6a8] sm:$0xff] %vm704, %v2582
  %2804 = vst [vmem:[%s6 + $0x6b0] sm:$0xff] %v2586
  %2805 = vst.msk [vmem:[%s6 + $0x6b8] sm:$0xff] %vm704, %v2588
  // Predicated region
  $region26: #{tpu_custom_call.1} parent=0 // pred_check
    _
  $region27: #{tpu_custom_call.1} parent=0 // pred_check_branch
    %2807 = sbr.rel (0) target = $region29
  $region28: #{tpu_custom_call.1} parent=0 // pred_region
    _
  $region29: #{tpu_custom_call.1} parent=0 // pred_fallthru
    _
  // Predicated region
  $region30: #{tpu_custom_call.1} parent=0 // pred_check
    _
  $region31: #{tpu_custom_call.1} parent=0 // pred_check_branch
    %2809 = sbr.rel (0) target = $region33
  $region32: #{tpu_custom_call.1} parent=0 // pred_region
    _
  $region33: #{tpu_custom_call.1} parent=0 // pred_fallthru
    _

</llo_original>
